<compile_context>
chip_gen: v6e
topology: v6e:2x2x1
jax: 0.10.0
libtpu: 0.0.40
codegen_flags: <defaults>
</compile_context>

<pallas_src>
import functools

import jax
import jax.numpy as jnp
import numpy as np
from jax.experimental import pallas as pl
from jax.experimental.pallas import tpu as pltpu

# ---------------- GrokConfig (subset, small synthetic sizes) ----------------
HIDDEN_SIZE = 32
NUM_HEADS = 4
NUM_KV_HEADS = 2
HEAD_DIM = HIDDEN_SIZE // NUM_HEADS          # 8
NUM_KV_GROUPS = NUM_HEADS // NUM_KV_HEADS    # 2
MAX_POS = 64
ROPE_THETA = 10000.0
ATTN_OUTPUT_MULTIPLIER = 0.08


# ------------------------------ fused Pallas kernel ------------------------------
def _grok_fused_kernel(x_ref, wqkv_ref, wo_ref, cos_ref, sf_ref, sb_ref, o_ref, *,
                       batch, seq_len, num_heads, num_kv_heads, head_dim,
                       attn_output_multiplier):
    f32 = jnp.float32
    B, S, D, H, Hkv = batch, seq_len, head_dim, num_heads, num_kv_heads
    group = H // Hkv
    half = D // 2
    HD = H * D
    KD = Hkv * D
    QKW = HD + KD            # packed q|k lane width that receives RoPE
    BS = B * S
    hidden = x_ref.shape[2]

    x = x_ref[...].reshape(BS, hidden).astype(f32)                    # (B*S, hidden)

    # ---- fused QKV projection: one MXU push instead of three ----
    qkv = jnp.dot(x, wqkv_ref[...].astype(f32),
                  preferred_element_type=f32)                          # (B*S, HD+2*KD)

    # ---- RoPE on the packed q|k slab (one roll pair covers q and k) ----
    cos_d = cos_ref[...].reshape(BS, D).astype(f32)
    sf_d = sf_ref[...].reshape(BS, D).astype(f32)   # +sin on second-half lanes, else 0
    sb_d = sb_ref[...].reshape(BS, D).astype(f32)   # -sin on first-half lanes, else 0
    reps = H + Hkv
    cos_p = jnp.concatenate([cos_d] * reps, axis=1)                    # (B*S, QKW)
    sf_p = jnp.concatenate([sf_d] * reps, axis=1)
    sb_p = jnp.concatenate([sb_d] * reps, axis=1)

    qk = qkv[:, :QKW]
    fwd = pltpu.roll(qk, shift=half, axis=1)          # fwd[j] = qk[j - half]
    bwd = pltpu.roll(qk, shift=QKW - half, axis=1)    # bwd[j] = qk[j + half]
    # rotate_half folded into signed/masked sin tables: no iota/mod/select needed.
    qk = qk * cos_p + fwd * sf_p + bwd * sb_p

    q = qk[:, :HD] * attn_output_multiplier           # fold score multiplier into q
    k = qk[:, HD:]
    v = qkv[:, QKW:]

    wo = wo_ref[...].astype(f32)                       # (H*D, hidden)

    # ---- causal additive mask, computed in-kernel (no O(S^2) HBM traffic) ----
    q_pos = jax.lax.broadcasted_iota(jnp.int32, (S, S), dimension=0)
    k_pos = jax.lax.broadcasted_iota(jnp.int32, (S, S), dimension=1)
    causal = k_pos <= q_pos
    neg = jnp.finfo(f32).min

    # Contract q_h (S, D) with k_h (S, D) on the D axis -> (S, S); K stays in
    # its native (S, D) layout.
    contract = (((1,), (1,)), ((), ()))

    for b in range(B):                                 # static loops: B, H tiny
        r0 = b * S
        out_b = jnp.zeros((S, hidden), f32)
        for h in range(H):
            kvh = h // group                            # GQA: heads share K/V slices
            q_h = q[r0:r0 + S, h * D:(h + 1) * D]
            k_h = k[r0:r0 + S, kvh * D:(kvh + 1) * D]
            v_h = v[r0:r0 + S, kvh * D:(kvh + 1) * D]

            s = jax.lax.dot_general(q_h, k_h, contract, preferred_element_type=f32)
            s = 30.0 * jnp.tanh(s * (1.0 / 30.0))
            s = jnp.where(causal, s, neg)

            # softmax in float32 (matches torch softmax(dtype=float32));
            # exact reciprocal keeps validation bit-close.
            # TODO(synk): use pl.reciprocal(..., approx=True) in production (EUP slot).
            s = s - jnp.max(s, axis=-1, keepdims=True)
            p = jnp.exp(s)
            p = p / jnp.sum(p, axis=-1, keepdims=True)

            pv = jnp.dot(p, v_h, preferred_element_type=f32)            # (S, D)
            # Per-head accumulation of the output projection: removes the
            # lane-axis concatenate of head outputs entirely.
            out_b = out_b + jnp.dot(pv, wo[h * D:(h + 1) * D, :],
                                    preferred_element_type=f32)
        o_ref[b] = out_b.astype(o_ref.dtype)


def grok_attention_fused(hidden_states, wqkv_t, wo_t, cos, sin_fwd, sin_bwd):
    """hidden_states: (B, S, hidden); wqkv_t: (hidden, (H+2*Hkv)*D); wo_t: (H*D, hidden);
    cos/sin_fwd/sin_bwd: (B, S, D).  Returns (B, S, hidden)."""
    B, S, Hsz = hidden_states.shape
    QKVW = wqkv_t.shape[1]
    HD = wo_t.shape[0]
    D = cos.shape[-1]

    kernel = functools.partial(
        _grok_fused_kernel,
        batch=B,
        seq_len=S,
        num_heads=NUM_HEADS,
        num_kv_heads=NUM_KV_HEADS,
        head_dim=HEAD_DIM,
        attn_output_multiplier=ATTN_OUTPUT_MULTIPLIER,
    )
    return pl.pallas_call(
        kernel,
        out_shape=jax.ShapeDtypeStruct((B, S, Hsz), hidden_states.dtype),
        grid=(1,),   # single step: no per-step pipeline overhead on 1-TC chips
        in_specs=[
            pl.BlockSpec((B, S, Hsz), lambda i: (0, 0, 0)),   # hidden_states (full block)
            pl.BlockSpec((Hsz, QKVW), lambda i: (0, 0)),      # fused wqkv_t
            pl.BlockSpec((HD, Hsz), lambda i: (0, 0)),        # wo_t
            pl.BlockSpec((B, S, D), lambda i: (0, 0, 0)),     # cos  (NOT tiled by H)
            pl.BlockSpec((B, S, D), lambda i: (0, 0, 0)),     # sin_fwd (masked +sin)
            pl.BlockSpec((B, S, D), lambda i: (0, 0, 0)),     # sin_bwd (masked -sin)
        ],
        out_specs=pl.BlockSpec((B, S, Hsz), lambda i: (0, 0, 0)),
    )(hidden_states, wqkv_t, wo_t, cos, sin_fwd, sin_bwd)


# ------------------------------ glue / wrapper -------------------------------
def rotary_tables(dim, max_pos, base):
    inv_freq = 1.0 / (base ** (jnp.arange(0, dim, 2, dtype=jnp.float32) / dim))
    t = jnp.arange(max_pos, dtype=jnp.float32)
    freqs = jnp.outer(t, inv_freq)
    emb = jnp.concatenate([freqs, freqs], axis=-1)
    return jnp.cos(emb), jnp.sin(emb)


def prepare_params(params):
    """One-time weight prep, outside the per-call hot path: transpose the
    torch-layout (out, in) weights and fuse wq|wk|wv along the output axis."""
    wq_t = jnp.asarray(params["wq"]).T   # (hidden, H*D)
    wk_t = jnp.asarray(params["wk"]).T   # (hidden, Hkv*D)
    wv_t = jnp.asarray(params["wv"]).T   # (hidden, Hkv*D)
    return {
        "wqkv_t": jnp.concatenate([wq_t, wk_t, wv_t], axis=1),   # (hidden, (H+2*Hkv)*D)
        "wo_t": jnp.asarray(params["wo"]).T,                      # (H*D, hidden)
    }


def grok_attention_forward(hidden_states, position_ids, prepared):
    B, S, _ = hidden_states.shape
    cos_cached, sin_cached = rotary_tables(HEAD_DIM, MAX_POS, ROPE_THETA)
    cos = cos_cached[position_ids]                     # (B, S, D)
    sin = sin_cached[position_ids]                     # (B, S, D)
    # Pre-fold the rotate_half sign/select into two masked sin tables so the
    # kernel needs no iota / mod / where:
    #   j <  D/2 : rot*sin = -t[j+half] * sin[j]  -> bwd * sin_bwd
    #   j >= D/2 : rot*sin = +t[j-half] * sin[j]  -> fwd * sin_fwd
    lane = jnp.arange(HEAD_DIM)
    half = HEAD_DIM // 2
    sin_fwd = jnp.where(lane >= half, sin, 0.0)
    sin_bwd = jnp.where(lane < half, -sin, 0.0)
    return grok_attention_fused(hidden_states, prepared["wqkv_t"], prepared["wo_t"],
                                cos, sin_fwd, sin_bwd)


# ---------------------------- pure-JAX reference -----------------------------
def _rotate_half_ref(x):
    half = x.shape[-1] // 2
    return jnp.concatenate([-x[..., half:], x[..., :half]], axis=-1)


def reference_forward(hidden_states, attention_mask, position_ids, params):
    B, S, Hsz = hidden_states.shape
    q = hidden_states @ params["wq"].T
    k = hidden_states @ params["wk"].T
    v = hidden_states @ params["wv"].T
    q = q.reshape(B, S, NUM_HEADS, HEAD_DIM).transpose(0, 2, 1, 3)
    k = k.reshape(B, S, NUM_KV_HEADS, HEAD_DIM).transpose(0, 2, 1, 3)
    v = v.reshape(B, S, NUM_KV_HEADS, HEAD_DIM).transpose(0, 2, 1, 3)

    cos_cached, sin_cached = rotary_tables(HEAD_DIM, MAX_POS, ROPE_THETA)
    cos = cos_cached[position_ids][:, None]     # (B, 1, S, D)
    sin = sin_cached[position_ids][:, None]
    q = q * cos + _rotate_half_ref(q) * sin
    k = k * cos + _rotate_half_ref(k) * sin

    k = jnp.repeat(k, NUM_KV_GROUPS, axis=1)
    v = jnp.repeat(v, NUM_KV_GROUPS, axis=1)

    w = jnp.einsum("bhqd,bhkd->bhqk", q, k) * ATTN_OUTPUT_MULTIPLIER
    w = 30.0 * jnp.tanh(w / 30.0)
    w = w + attention_mask
    w = jax.nn.softmax(w.astype(jnp.float32), axis=-1).astype(q.dtype)
    o = jnp.einsum("bhqk,bhkd->bhqd", w, v)
    o = o.transpose(0, 2, 1, 3).reshape(B, S, Hsz)
    return o @ params["wo"].T


# ----------------------------------- main ------------------------------------
if __name__ == "__main__":
    B, S = 2, 8
    key = jax.random.PRNGKey(0)
    kx, kq, kk, kv, ko = jax.random.split(key, 5)

    hidden_states = jax.random.normal(kx, (B, S, HIDDEN_SIZE), jnp.float32)
    params = {
        "wq": 0.05 * jax.random.normal(kq, (NUM_HEADS * HEAD_DIM, HIDDEN_SIZE), jnp.float32),
        "wk": 0.05 * jax.random.normal(kk, (NUM_KV_HEADS * HEAD_DIM, HIDDEN_SIZE), jnp.float32),
        "wv": 0.05 * jax.random.normal(kv, (NUM_KV_HEADS * HEAD_DIM, HIDDEN_SIZE), jnp.float32),
        "wo": 0.05 * jax.random.normal(ko, (HIDDEN_SIZE, NUM_HEADS * HEAD_DIM), jnp.float32),
    }
    position_ids = jnp.broadcast_to(jnp.arange(S), (B, S))

    prepared = prepare_params(params)   # one-time weight transpose + QKV fusion

    out = grok_attention_forward(hidden_states, position_ids, prepared)
    out = jax.block_until_ready(out)

    # Reference uses the standard explicit causal additive mask (B, 1, S, S),
    # identical to the mask the fused kernel builds in-kernel.
    neg = jnp.finfo(jnp.float32).min
    causal = jnp.triu(jnp.full((S, S), neg, jnp.float32), k=1)
    attention_mask = jnp.broadcast_to(causal, (B, 1, S, S))
    ref = reference_forward(hidden_states, attention_mask, position_ids, params)

    np.testing.assert_allclose(np.asarray(out), np.asarray(ref), rtol=2e-3, atol=2e-3)

    print("KERNEL_OK")
</pallas_src>

<mosaic_0001>
module attributes {stable_mosaic.version = 11 : i64} {
  func.func @_grok_fused_kernel(%arg0: i32, %arg1: memref<2x8x32xf32, #tpu.memory_space<vmem>>, %arg2: memref<32x64xf32, #tpu.memory_space<vmem>>, %arg3: memref<32x32xf32, #tpu.memory_space<vmem>>, %arg4: memref<2x8x8xf32, #tpu.memory_space<vmem>>, %arg5: memref<2x8x8xf32, #tpu.memory_space<vmem>>, %arg6: memref<2x8x8xf32, #tpu.memory_space<vmem>>, %arg7: memref<2x8x32xf32, #tpu.memory_space<vmem>>) attributes {dimension_semantics = [#tpu.dimension_semantics<arbitrary>], iteration_bounds = array<i64: 1>, scalar_prefetch = 0 : i64, scratch_operands = 0 : i64, tpu.core_type = #tpu.core_type<tc>, window_params = [{pipeline_mode = #tpu.pipeline_mode<synchronous>, transform_indices = @transform_0, window_bounds = array<i64: 2, 8, 32>}, {pipeline_mode = #tpu.pipeline_mode<synchronous>, transform_indices = @transform_1, window_bounds = array<i64: 32, 64>}, {pipeline_mode = #tpu.pipeline_mode<synchronous>, transform_indices = @transform_2, window_bounds = array<i64: 32, 32>}, {pipeline_mode = #tpu.pipeline_mode<synchronous>, transform_indices = @transform_3, window_bounds = array<i64: 2, 8, 8>}, {pipeline_mode = #tpu.pipeline_mode<synchronous>, transform_indices = @transform_4, window_bounds = array<i64: 2, 8, 8>}, {pipeline_mode = #tpu.pipeline_mode<synchronous>, transform_indices = @transform_5, window_bounds = array<i64: 2, 8, 8>}, {pipeline_mode = #tpu.pipeline_mode<synchronous>, transform_indices = @transform_6, window_bounds = array<i64: 2, 8, 32>}]} {
    %c0 = arith.constant 0 : index
    %c0_0 = arith.constant 0 : index
    %c0_1 = arith.constant 0 : index
    %0 = vector.load %arg1[%c0, %c0_0, %c0_1] : memref<2x8x32xf32, #tpu.memory_space<vmem>>, vector<2x8x32xf32>
    %1 = vector.shape_cast %0 : vector<2x8x32xf32> to vector<16x32xf32>
    %c0_2 = arith.constant 0 : index
    %c0_3 = arith.constant 0 : index
    %2 = vector.load %arg2[%c0_2, %c0_3] : memref<32x64xf32, #tpu.memory_space<vmem>>, vector<32x64xf32>
    %cst = arith.constant dense<0.000000e+00> : vector<16x64xf32>
    %3 = tpu.matmul %1, %2, %cst {dimension_numbers = #tpu.dot_dimension_numbers<[1], [0], [0], [1], [0, 0, 1, 1], [], []>} : vector<16x32xf32>, vector<32x64xf32>, vector<16x64xf32> -> vector<16x64xf32>
    %c0_4 = arith.constant 0 : index
    %c0_5 = arith.constant 0 : index
    %c0_6 = arith.constant 0 : index
    %4 = vector.load %arg4[%c0_4, %c0_5, %c0_6] : memref<2x8x8xf32, #tpu.memory_space<vmem>>, vector<2x8x8xf32>
    %5 = vector.shape_cast %4 : vector<2x8x8xf32> to vector<16x8xf32>
    %c0_7 = arith.constant 0 : index
    %c0_8 = arith.constant 0 : index
    %c0_9 = arith.constant 0 : index
    %6 = vector.load %arg5[%c0_7, %c0_8, %c0_9] : memref<2x8x8xf32, #tpu.memory_space<vmem>>, vector<2x8x8xf32>
    %7 = vector.shape_cast %6 : vector<2x8x8xf32> to vector<16x8xf32>
    %c0_10 = arith.constant 0 : index
    %c0_11 = arith.constant 0 : index
    %c0_12 = arith.constant 0 : index
    %8 = vector.load %arg6[%c0_10, %c0_11, %c0_12] : memref<2x8x8xf32, #tpu.memory_space<vmem>>, vector<2x8x8xf32>
    %9 = vector.shape_cast %8 : vector<2x8x8xf32> to vector<16x8xf32>
    %10 = tpu.concatenate %5, %5, %5, %5, %5, %5 in 1 : vector<16x8xf32>, vector<16x8xf32>, vector<16x8xf32>, vector<16x8xf32>, vector<16x8xf32>, vector<16x8xf32> -> vector<16x48xf32>
    %11 = tpu.concatenate %7, %7, %7, %7, %7, %7 in 1 : vector<16x8xf32>, vector<16x8xf32>, vector<16x8xf32>, vector<16x8xf32>, vector<16x8xf32>, vector<16x8xf32> -> vector<16x48xf32>
    %12 = tpu.concatenate %9, %9, %9, %9, %9, %9 in 1 : vector<16x8xf32>, vector<16x8xf32>, vector<16x8xf32>, vector<16x8xf32>, vector<16x8xf32>, vector<16x8xf32> -> vector<16x48xf32>
    %13 = vector.extract_strided_slice %3 {offsets = [0, 0], sizes = [16, 48], strides = [1, 1]} : vector<16x64xf32> to vector<16x48xf32>
    %c4_i32 = arith.constant 4 : i32
    %14 = tpu.dynamic_rotate %13 by %c4_i32 dim 1 : vector<16x48xf32>, i32 -> vector<16x48xf32>
    %c44_i32 = arith.constant 44 : i32
    %15 = tpu.dynamic_rotate %13 by %c44_i32 dim 1 : vector<16x48xf32>, i32 -> vector<16x48xf32>
    %16 = arith.mulf %13, %10 : vector<16x48xf32>
    %17 = arith.mulf %14, %11 : vector<16x48xf32>
    %18 = arith.addf %16, %17 : vector<16x48xf32>
    %19 = arith.mulf %15, %12 : vector<16x48xf32>
    %20 = arith.addf %18, %19 : vector<16x48xf32>
    %21 = vector.extract_strided_slice %20 {offsets = [0, 0], sizes = [16, 32], strides = [1, 1]} : vector<16x48xf32> to vector<16x32xf32>
    %cst_13 = arith.constant 8.000000e-02 : f32
    %22 = vector.broadcast %cst_13 : f32 to vector<16x32xf32>
    %23 = arith.mulf %21, %22 : vector<16x32xf32>
    %24 = vector.extract_strided_slice %20 {offsets = [0, 32], sizes = [16, 16], strides = [1, 1]} : vector<16x48xf32> to vector<16x16xf32>
    %25 = vector.extract_strided_slice %3 {offsets = [0, 48], sizes = [16, 16], strides = [1, 1]} : vector<16x64xf32> to vector<16x16xf32>
    %c0_14 = arith.constant 0 : index
    %c0_15 = arith.constant 0 : index
    %26 = vector.load %arg3[%c0_14, %c0_15] : memref<32x32xf32, #tpu.memory_space<vmem>>, vector<32x32xf32>
    %27 = tpu.iota {dimensions = array<i32: 0>} : vector<8x8xi32>
    %28 = tpu.iota {dimensions = array<i32: 1>} : vector<8x8xi32>
    %29 = arith.cmpi sle, %28, %27 : vector<8x8xi32>
    %cst_16 = arith.constant 0.000000e+00 : f32
    %30 = vector.broadcast %cst_16 : f32 to vector<8x32xf32>
    %31 = vector.extract_strided_slice %23 {offsets = [0, 0], sizes = [8, 8], strides = [1, 1]} : vector<16x32xf32> to vector<8x8xf32>
    %32 = vector.extract_strided_slice %24 {offsets = [0, 0], sizes = [8, 8], strides = [1, 1]} : vector<16x16xf32> to vector<8x8xf32>
    %33 = vector.extract_strided_slice %25 {offsets = [0, 0], sizes = [8, 8], strides = [1, 1]} : vector<16x16xf32> to vector<8x8xf32>
    %cst_17 = arith.constant dense<0.000000e+00> : vector<8x8xf32>
    %34 = tpu.matmul %31, %32, %cst_17 {dimension_numbers = #tpu.dot_dimension_numbers<[1], [1], [0], [0], [0, 0, 1, 0], [], []>} : vector<8x8xf32>, vector<8x8xf32>, vector<8x8xf32> -> vector<8x8xf32>
    %cst_18 = arith.constant 0.0333333351 : f32
    %35 = vector.broadcast %cst_18 : f32 to vector<8x8xf32>
    %36 = arith.mulf %34, %35 : vector<8x8xf32>
    %37 = math.tanh %36 : vector<8x8xf32>
    %cst_19 = arith.constant 3.000000e+01 : f32
    %38 = vector.broadcast %cst_19 : f32 to vector<8x8xf32>
    %39 = arith.mulf %38, %37 : vector<8x8xf32>
    %cst_20 = arith.constant -3.40282347E+38 : f32
    %40 = vector.broadcast %cst_20 : f32 to vector<8x8xf32>
    %41 = arith.select %29, %39, %40 : vector<8x8xi1>, vector<8x8xf32>
    %cst_21 = arith.constant dense<0xFF800000> : vector<8xf32>
    %42 = vector.multi_reduction <maximumf>, %41, %cst_21 [1] : vector<8x8xf32> to vector<8xf32>
    %43 = vector.shape_cast %42 : vector<8xf32> to vector<8x1xf32>
    %44 = vector.broadcast %43 : vector<8x1xf32> to vector<8x8xf32>
    %45 = arith.subf %41, %44 : vector<8x8xf32>
    %46 = math.exp %45 : vector<8x8xf32>
    %cst_22 = arith.constant dense<0.000000e+00> : vector<8xf32>
    %47 = vector.multi_reduction <add>, %46, %cst_22 [1] : vector<8x8xf32> to vector<8xf32>
    %48 = vector.shape_cast %47 : vector<8xf32> to vector<8x1xf32>
    %49 = vector.broadcast %48 : vector<8x1xf32> to vector<8x8xf32>
    %50 = arith.divf %46, %49 : vector<8x8xf32>
    %cst_23 = arith.constant dense<0.000000e+00> : vector<8x8xf32>
    %51 = tpu.matmul %50, %33, %cst_23 {dimension_numbers = #tpu.dot_dimension_numbers<[1], [0], [0], [1], [0, 0, 1, 1], [], []>} : vector<8x8xf32>, vector<8x8xf32>, vector<8x8xf32> -> vector<8x8xf32>
    %52 = vector.extract_strided_slice %26 {offsets = [0, 0], sizes = [8, 32], strides = [1, 1]} : vector<32x32xf32> to vector<8x32xf32>
    %cst_24 = arith.constant dense<0.000000e+00> : vector<8x32xf32>
    %53 = tpu.matmul %51, %52, %cst_24 {dimension_numbers = #tpu.dot_dimension_numbers<[1], [0], [0], [1], [0, 0, 1, 1], [], []>} : vector<8x8xf32>, vector<8x32xf32>, vector<8x32xf32> -> vector<8x32xf32>
    %54 = arith.addf %30, %53 : vector<8x32xf32>
    %55 = vector.extract_strided_slice %23 {offsets = [0, 8], sizes = [8, 8], strides = [1, 1]} : vector<16x32xf32> to vector<8x8xf32>
    %56 = vector.extract_strided_slice %24 {offsets = [0, 0], sizes = [8, 8], strides = [1, 1]} : vector<16x16xf32> to vector<8x8xf32>
    %57 = vector.extract_strided_slice %25 {offsets = [0, 0], sizes = [8, 8], strides = [1, 1]} : vector<16x16xf32> to vector<8x8xf32>
    %cst_25 = arith.constant dense<0.000000e+00> : vector<8x8xf32>
    %58 = tpu.matmul %55, %56, %cst_25 {dimension_numbers = #tpu.dot_dimension_numbers<[1], [1], [0], [0], [0, 0, 1, 0], [], []>} : vector<8x8xf32>, vector<8x8xf32>, vector<8x8xf32> -> vector<8x8xf32>
    %cst_26 = arith.constant 0.0333333351 : f32
    %59 = vector.broadcast %cst_26 : f32 to vector<8x8xf32>
    %60 = arith.mulf %58, %59 : vector<8x8xf32>
    %61 = math.tanh %60 : vector<8x8xf32>
    %cst_27 = arith.constant 3.000000e+01 : f32
    %62 = vector.broadcast %cst_27 : f32 to vector<8x8xf32>
    %63 = arith.mulf %62, %61 : vector<8x8xf32>
    %cst_28 = arith.constant -3.40282347E+38 : f32
    %64 = vector.broadcast %cst_28 : f32 to vector<8x8xf32>
    %65 = arith.select %29, %63, %64 : vector<8x8xi1>, vector<8x8xf32>
    %cst_29 = arith.constant dense<0xFF800000> : vector<8xf32>
    %66 = vector.multi_reduction <maximumf>, %65, %cst_29 [1] : vector<8x8xf32> to vector<8xf32>
    %67 = vector.shape_cast %66 : vector<8xf32> to vector<8x1xf32>
    %68 = vector.broadcast %67 : vector<8x1xf32> to vector<8x8xf32>
    %69 = arith.subf %65, %68 : vector<8x8xf32>
    %70 = math.exp %69 : vector<8x8xf32>
    %cst_30 = arith.constant dense<0.000000e+00> : vector<8xf32>
    %71 = vector.multi_reduction <add>, %70, %cst_30 [1] : vector<8x8xf32> to vector<8xf32>
    %72 = vector.shape_cast %71 : vector<8xf32> to vector<8x1xf32>
    %73 = vector.broadcast %72 : vector<8x1xf32> to vector<8x8xf32>
    %74 = arith.divf %70, %73 : vector<8x8xf32>
    %cst_31 = arith.constant dense<0.000000e+00> : vector<8x8xf32>
    %75 = tpu.matmul %74, %57, %cst_31 {dimension_numbers = #tpu.dot_dimension_numbers<[1], [0], [0], [1], [0, 0, 1, 1], [], []>} : vector<8x8xf32>, vector<8x8xf32>, vector<8x8xf32> -> vector<8x8xf32>
    %76 = vector.extract_strided_slice %26 {offsets = [8, 0], sizes = [8, 32], strides = [1, 1]} : vector<32x32xf32> to vector<8x32xf32>
    %cst_32 = arith.constant dense<0.000000e+00> : vector<8x32xf32>
    %77 = tpu.matmul %75, %76, %cst_32 {dimension_numbers = #tpu.dot_dimension_numbers<[1], [0], [0], [1], [0, 0, 1, 1], [], []>} : vector<8x8xf32>, vector<8x32xf32>, vector<8x32xf32> -> vector<8x32xf32>
    %78 = arith.addf %54, %77 : vector<8x32xf32>
    %79 = vector.extract_strided_slice %23 {offsets = [0, 16], sizes = [8, 8], strides = [1, 1]} : vector<16x32xf32> to vector<8x8xf32>
    %80 = vector.extract_strided_slice %24 {offsets = [0, 8], sizes = [8, 8], strides = [1, 1]} : vector<16x16xf32> to vector<8x8xf32>
    %81 = vector.extract_strided_slice %25 {offsets = [0, 8], sizes = [8, 8], strides = [1, 1]} : vector<16x16xf32> to vector<8x8xf32>
    %cst_33 = arith.constant dense<0.000000e+00> : vector<8x8xf32>
    %82 = tpu.matmul %79, %80, %cst_33 {dimension_numbers = #tpu.dot_dimension_numbers<[1], [1], [0], [0], [0, 0, 1, 0], [], []>} : vector<8x8xf32>, vector<8x8xf32>, vector<8x8xf32> -> vector<8x8xf32>
    %cst_34 = arith.constant 0.0333333351 : f32
    %83 = vector.broadcast %cst_34 : f32 to vector<8x8xf32>
    %84 = arith.mulf %82, %83 : vector<8x8xf32>
    %85 = math.tanh %84 : vector<8x8xf32>
    %cst_35 = arith.constant 3.000000e+01 : f32
    %86 = vector.broadcast %cst_35 : f32 to vector<8x8xf32>
    %87 = arith.mulf %86, %85 : vector<8x8xf32>
    %cst_36 = arith.constant -3.40282347E+38 : f32
    %88 = vector.broadcast %cst_36 : f32 to vector<8x8xf32>
    %89 = arith.select %29, %87, %88 : vector<8x8xi1>, vector<8x8xf32>
    %cst_37 = arith.constant dense<0xFF800000> : vector<8xf32>
    %90 = vector.multi_reduction <maximumf>, %89, %cst_37 [1] : vector<8x8xf32> to vector<8xf32>
    %91 = vector.shape_cast %90 : vector<8xf32> to vector<8x1xf32>
    %92 = vector.broadcast %91 : vector<8x1xf32> to vector<8x8xf32>
    %93 = arith.subf %89, %92 : vector<8x8xf32>
    %94 = math.exp %93 : vector<8x8xf32>
    %cst_38 = arith.constant dense<0.000000e+00> : vector<8xf32>
    %95 = vector.multi_reduction <add>, %94, %cst_38 [1] : vector<8x8xf32> to vector<8xf32>
    %96 = vector.shape_cast %95 : vector<8xf32> to vector<8x1xf32>
    %97 = vector.broadcast %96 : vector<8x1xf32> to vector<8x8xf32>
    %98 = arith.divf %94, %97 : vector<8x8xf32>
    %cst_39 = arith.constant dense<0.000000e+00> : vector<8x8xf32>
    %99 = tpu.matmul %98, %81, %cst_39 {dimension_numbers = #tpu.dot_dimension_numbers<[1], [0], [0], [1], [0, 0, 1, 1], [], []>} : vector<8x8xf32>, vector<8x8xf32>, vector<8x8xf32> -> vector<8x8xf32>
    %100 = vector.extract_strided_slice %26 {offsets = [16, 0], sizes = [8, 32], strides = [1, 1]} : vector<32x32xf32> to vector<8x32xf32>
    %cst_40 = arith.constant dense<0.000000e+00> : vector<8x32xf32>
    %101 = tpu.matmul %99, %100, %cst_40 {dimension_numbers = #tpu.dot_dimension_numbers<[1], [0], [0], [1], [0, 0, 1, 1], [], []>} : vector<8x8xf32>, vector<8x32xf32>, vector<8x32xf32> -> vector<8x32xf32>
    %102 = arith.addf %78, %101 : vector<8x32xf32>
    %103 = vector.extract_strided_slice %23 {offsets = [0, 24], sizes = [8, 8], strides = [1, 1]} : vector<16x32xf32> to vector<8x8xf32>
    %104 = vector.extract_strided_slice %24 {offsets = [0, 8], sizes = [8, 8], strides = [1, 1]} : vector<16x16xf32> to vector<8x8xf32>
    %105 = vector.extract_strided_slice %25 {offsets = [0, 8], sizes = [8, 8], strides = [1, 1]} : vector<16x16xf32> to vector<8x8xf32>
    %cst_41 = arith.constant dense<0.000000e+00> : vector<8x8xf32>
    %106 = tpu.matmul %103, %104, %cst_41 {dimension_numbers = #tpu.dot_dimension_numbers<[1], [1], [0], [0], [0, 0, 1, 0], [], []>} : vector<8x8xf32>, vector<8x8xf32>, vector<8x8xf32> -> vector<8x8xf32>
    %cst_42 = arith.constant 0.0333333351 : f32
    %107 = vector.broadcast %cst_42 : f32 to vector<8x8xf32>
    %108 = arith.mulf %106, %107 : vector<8x8xf32>
    %109 = math.tanh %108 : vector<8x8xf32>
    %cst_43 = arith.constant 3.000000e+01 : f32
    %110 = vector.broadcast %cst_43 : f32 to vector<8x8xf32>
    %111 = arith.mulf %110, %109 : vector<8x8xf32>
    %cst_44 = arith.constant -3.40282347E+38 : f32
    %112 = vector.broadcast %cst_44 : f32 to vector<8x8xf32>
    %113 = arith.select %29, %111, %112 : vector<8x8xi1>, vector<8x8xf32>
    %cst_45 = arith.constant dense<0xFF800000> : vector<8xf32>
    %114 = vector.multi_reduction <maximumf>, %113, %cst_45 [1] : vector<8x8xf32> to vector<8xf32>
    %115 = vector.shape_cast %114 : vector<8xf32> to vector<8x1xf32>
    %116 = vector.broadcast %115 : vector<8x1xf32> to vector<8x8xf32>
    %117 = arith.subf %113, %116 : vector<8x8xf32>
    %118 = math.exp %117 : vector<8x8xf32>
    %cst_46 = arith.constant dense<0.000000e+00> : vector<8xf32>
    %119 = vector.multi_reduction <add>, %118, %cst_46 [1] : vector<8x8xf32> to vector<8xf32>
    %120 = vector.shape_cast %119 : vector<8xf32> to vector<8x1xf32>
    %121 = vector.broadcast %120 : vector<8x1xf32> to vector<8x8xf32>
    %122 = arith.divf %118, %121 : vector<8x8xf32>
    %cst_47 = arith.constant dense<0.000000e+00> : vector<8x8xf32>
    %123 = tpu.matmul %122, %105, %cst_47 {dimension_numbers = #tpu.dot_dimension_numbers<[1], [0], [0], [1], [0, 0, 1, 1], [], []>} : vector<8x8xf32>, vector<8x8xf32>, vector<8x8xf32> -> vector<8x8xf32>
    %124 = vector.extract_strided_slice %26 {offsets = [24, 0], sizes = [8, 32], strides = [1, 1]} : vector<32x32xf32> to vector<8x32xf32>
    %cst_48 = arith.constant dense<0.000000e+00> : vector<8x32xf32>
    %125 = tpu.matmul %123, %124, %cst_48 {dimension_numbers = #tpu.dot_dimension_numbers<[1], [0], [0], [1], [0, 0, 1, 1], [], []>} : vector<8x8xf32>, vector<8x32xf32>, vector<8x32xf32> -> vector<8x32xf32>
    %126 = arith.addf %102, %125 : vector<8x32xf32>
    %c0_49 = arith.constant 0 : index
    %c0_50 = arith.constant 0 : index
    %c0_51 = arith.constant 0 : index
    %127 = vector.load %arg7[%c0_49, %c0_50, %c0_51] : memref<2x8x32xf32, #tpu.memory_space<vmem>>, vector<1x8x32xf32>
    %128 = vector.shape_cast %127 : vector<1x8x32xf32> to vector<8x32xf32>
    %129 = vector.shape_cast %126 : vector<8x32xf32> to vector<1x8x32xf32>
    tpu.vector_store %arg7[%c0_49, %c0_50, %c0_51], %129 {strides = array<i32>} : memref<2x8x32xf32, #tpu.memory_space<vmem>>, vector<1x8x32xf32>,
    %cst_52 = arith.constant 0.000000e+00 : f32
    %130 = vector.broadcast %cst_52 : f32 to vector<8x32xf32>
    %131 = vector.extract_strided_slice %23 {offsets = [8, 0], sizes = [8, 8], strides = [1, 1]} : vector<16x32xf32> to vector<8x8xf32>
    %132 = vector.extract_strided_slice %24 {offsets = [8, 0], sizes = [8, 8], strides = [1, 1]} : vector<16x16xf32> to vector<8x8xf32>
    %133 = vector.extract_strided_slice %25 {offsets = [8, 0], sizes = [8, 8], strides = [1, 1]} : vector<16x16xf32> to vector<8x8xf32>
    %cst_53 = arith.constant dense<0.000000e+00> : vector<8x8xf32>
    %134 = tpu.matmul %131, %132, %cst_53 {dimension_numbers = #tpu.dot_dimension_numbers<[1], [1], [0], [0], [0, 0, 1, 0], [], []>} : vector<8x8xf32>, vector<8x8xf32>, vector<8x8xf32> -> vector<8x8xf32>
    %cst_54 = arith.constant 0.0333333351 : f32
    %135 = vector.broadcast %cst_54 : f32 to vector<8x8xf32>
    %136 = arith.mulf %134, %135 : vector<8x8xf32>
    %137 = math.tanh %136 : vector<8x8xf32>
    %cst_55 = arith.constant 3.000000e+01 : f32
    %138 = vector.broadcast %cst_55 : f32 to vector<8x8xf32>
    %139 = arith.mulf %138, %137 : vector<8x8xf32>
    %cst_56 = arith.constant -3.40282347E+38 : f32
    %140 = vector.broadcast %cst_56 : f32 to vector<8x8xf32>
    %141 = arith.select %29, %139, %140 : vector<8x8xi1>, vector<8x8xf32>
    %cst_57 = arith.constant dense<0xFF800000> : vector<8xf32>
    %142 = vector.multi_reduction <maximumf>, %141, %cst_57 [1] : vector<8x8xf32> to vector<8xf32>
    %143 = vector.shape_cast %142 : vector<8xf32> to vector<8x1xf32>
    %144 = vector.broadcast %143 : vector<8x1xf32> to vector<8x8xf32>
    %145 = arith.subf %141, %144 : vector<8x8xf32>
    %146 = math.exp %145 : vector<8x8xf32>
    %cst_58 = arith.constant dense<0.000000e+00> : vector<8xf32>
    %147 = vector.multi_reduction <add>, %146, %cst_58 [1] : vector<8x8xf32> to vector<8xf32>
    %148 = vector.shape_cast %147 : vector<8xf32> to vector<8x1xf32>
    %149 = vector.broadcast %148 : vector<8x1xf32> to vector<8x8xf32>
    %150 = arith.divf %146, %149 : vector<8x8xf32>
    %cst_59 = arith.constant dense<0.000000e+00> : vector<8x8xf32>
    %151 = tpu.matmul %150, %133, %cst_59 {dimension_numbers = #tpu.dot_dimension_numbers<[1], [0], [0], [1], [0, 0, 1, 1], [], []>} : vector<8x8xf32>, vector<8x8xf32>, vector<8x8xf32> -> vector<8x8xf32>
    %152 = vector.extract_strided_slice %26 {offsets = [0, 0], sizes = [8, 32], strides = [1, 1]} : vector<32x32xf32> to vector<8x32xf32>
    %cst_60 = arith.constant dense<0.000000e+00> : vector<8x32xf32>
    %153 = tpu.matmul %151, %152, %cst_60 {dimension_numbers = #tpu.dot_dimension_numbers<[1], [0], [0], [1], [0, 0, 1, 1], [], []>} : vector<8x8xf32>, vector<8x32xf32>, vector<8x32xf32> -> vector<8x32xf32>
    %154 = arith.addf %130, %153 : vector<8x32xf32>
    %155 = vector.extract_strided_slice %23 {offsets = [8, 8], sizes = [8, 8], strides = [1, 1]} : vector<16x32xf32> to vector<8x8xf32>
    %156 = vector.extract_strided_slice %24 {offsets = [8, 0], sizes = [8, 8], strides = [1, 1]} : vector<16x16xf32> to vector<8x8xf32>
    %157 = vector.extract_strided_slice %25 {offsets = [8, 0], sizes = [8, 8], strides = [1, 1]} : vector<16x16xf32> to vector<8x8xf32>
    %cst_61 = arith.constant dense<0.000000e+00> : vector<8x8xf32>
    %158 = tpu.matmul %155, %156, %cst_61 {dimension_numbers = #tpu.dot_dimension_numbers<[1], [1], [0], [0], [0, 0, 1, 0], [], []>} : vector<8x8xf32>, vector<8x8xf32>, vector<8x8xf32> -> vector<8x8xf32>
    %cst_62 = arith.constant 0.0333333351 : f32
    %159 = vector.broadcast %cst_62 : f32 to vector<8x8xf32>
    %160 = arith.mulf %158, %159 : vector<8x8xf32>
    %161 = math.tanh %160 : vector<8x8xf32>
    %cst_63 = arith.constant 3.000000e+01 : f32
    %162 = vector.broadcast %cst_63 : f32 to vector<8x8xf32>
    %163 = arith.mulf %162, %161 : vector<8x8xf32>
    %cst_64 = arith.constant -3.40282347E+38 : f32
    %164 = vector.broadcast %cst_64 : f32 to vector<8x8xf32>
    %165 = arith.select %29, %163, %164 : vector<8x8xi1>, vector<8x8xf32>
    %cst_65 = arith.constant dense<0xFF800000> : vector<8xf32>
    %166 = vector.multi_reduction <maximumf>, %165, %cst_65 [1] : vector<8x8xf32> to vector<8xf32>
    %167 = vector.shape_cast %166 : vector<8xf32> to vector<8x1xf32>
    %168 = vector.broadcast %167 : vector<8x1xf32> to vector<8x8xf32>
    %169 = arith.subf %165, %168 : vector<8x8xf32>
    %170 = math.exp %169 : vector<8x8xf32>
    %cst_66 = arith.constant dense<0.000000e+00> : vector<8xf32>
    %171 = vector.multi_reduction <add>, %170, %cst_66 [1] : vector<8x8xf32> to vector<8xf32>
    %172 = vector.shape_cast %171 : vector<8xf32> to vector<8x1xf32>
    %173 = vector.broadcast %172 : vector<8x1xf32> to vector<8x8xf32>
    %174 = arith.divf %170, %173 : vector<8x8xf32>
    %cst_67 = arith.constant dense<0.000000e+00> : vector<8x8xf32>
    %175 = tpu.matmul %174, %157, %cst_67 {dimension_numbers = #tpu.dot_dimension_numbers<[1], [0], [0], [1], [0, 0, 1, 1], [], []>} : vector<8x8xf32>, vector<8x8xf32>, vector<8x8xf32> -> vector<8x8xf32>
    %176 = vector.extract_strided_slice %26 {offsets = [8, 0], sizes = [8, 32], strides = [1, 1]} : vector<32x32xf32> to vector<8x32xf32>
    %cst_68 = arith.constant dense<0.000000e+00> : vector<8x32xf32>
    %177 = tpu.matmul %175, %176, %cst_68 {dimension_numbers = #tpu.dot_dimension_numbers<[1], [0], [0], [1], [0, 0, 1, 1], [], []>} : vector<8x8xf32>, vector<8x32xf32>, vector<8x32xf32> -> vector<8x32xf32>
    %178 = arith.addf %154, %177 : vector<8x32xf32>
    %179 = vector.extract_strided_slice %23 {offsets = [8, 16], sizes = [8, 8], strides = [1, 1]} : vector<16x32xf32> to vector<8x8xf32>
    %180 = vector.extract_strided_slice %24 {offsets = [8, 8], sizes = [8, 8], strides = [1, 1]} : vector<16x16xf32> to vector<8x8xf32>
    %181 = vector.extract_strided_slice %25 {offsets = [8, 8], sizes = [8, 8], strides = [1, 1]} : vector<16x16xf32> to vector<8x8xf32>
    %cst_69 = arith.constant dense<0.000000e+00> : vector<8x8xf32>
    %182 = tpu.matmul %179, %180, %cst_69 {dimension_numbers = #tpu.dot_dimension_numbers<[1], [1], [0], [0], [0, 0, 1, 0], [], []>} : vector<8x8xf32>, vector<8x8xf32>, vector<8x8xf32> -> vector<8x8xf32>
    %cst_70 = arith.constant 0.0333333351 : f32
    %183 = vector.broadcast %cst_70 : f32 to vector<8x8xf32>
    %184 = arith.mulf %182, %183 : vector<8x8xf32>
    %185 = math.tanh %184 : vector<8x8xf32>
    %cst_71 = arith.constant 3.000000e+01 : f32
    %186 = vector.broadcast %cst_71 : f32 to vector<8x8xf32>
    %187 = arith.mulf %186, %185 : vector<8x8xf32>
    %cst_72 = arith.constant -3.40282347E+38 : f32
    %188 = vector.broadcast %cst_72 : f32 to vector<8x8xf32>
    %189 = arith.select %29, %187, %188 : vector<8x8xi1>, vector<8x8xf32>
    %cst_73 = arith.constant dense<0xFF800000> : vector<8xf32>
    %190 = vector.multi_reduction <maximumf>, %189, %cst_73 [1] : vector<8x8xf32> to vector<8xf32>
    %191 = vector.shape_cast %190 : vector<8xf32> to vector<8x1xf32>
    %192 = vector.broadcast %191 : vector<8x1xf32> to vector<8x8xf32>
    %193 = arith.subf %189, %192 : vector<8x8xf32>
    %194 = math.exp %193 : vector<8x8xf32>
    %cst_74 = arith.constant dense<0.000000e+00> : vector<8xf32>
    %195 = vector.multi_reduction <add>, %194, %cst_74 [1] : vector<8x8xf32> to vector<8xf32>
    %196 = vector.shape_cast %195 : vector<8xf32> to vector<8x1xf32>
    %197 = vector.broadcast %196 : vector<8x1xf32> to vector<8x8xf32>
    %198 = arith.divf %194, %197 : vector<8x8xf32>
    %cst_75 = arith.constant dense<0.000000e+00> : vector<8x8xf32>
    %199 = tpu.matmul %198, %181, %cst_75 {dimension_numbers = #tpu.dot_dimension_numbers<[1], [0], [0], [1], [0, 0, 1, 1], [], []>} : vector<8x8xf32>, vector<8x8xf32>, vector<8x8xf32> -> vector<8x8xf32>
    %200 = vector.extract_strided_slice %26 {offsets = [16, 0], sizes = [8, 32], strides = [1, 1]} : vector<32x32xf32> to vector<8x32xf32>
    %cst_76 = arith.constant dense<0.000000e+00> : vector<8x32xf32>
    %201 = tpu.matmul %199, %200, %cst_76 {dimension_numbers = #tpu.dot_dimension_numbers<[1], [0], [0], [1], [0, 0, 1, 1], [], []>} : vector<8x8xf32>, vector<8x32xf32>, vector<8x32xf32> -> vector<8x32xf32>
    %202 = arith.addf %178, %201 : vector<8x32xf32>
    %203 = vector.extract_strided_slice %23 {offsets = [8, 24], sizes = [8, 8], strides = [1, 1]} : vector<16x32xf32> to vector<8x8xf32>
    %204 = vector.extract_strided_slice %24 {offsets = [8, 8], sizes = [8, 8], strides = [1, 1]} : vector<16x16xf32> to vector<8x8xf32>
    %205 = vector.extract_strided_slice %25 {offsets = [8, 8], sizes = [8, 8], strides = [1, 1]} : vector<16x16xf32> to vector<8x8xf32>
    %cst_77 = arith.constant dense<0.000000e+00> : vector<8x8xf32>
    %206 = tpu.matmul %203, %204, %cst_77 {dimension_numbers = #tpu.dot_dimension_numbers<[1], [1], [0], [0], [0, 0, 1, 0], [], []>} : vector<8x8xf32>, vector<8x8xf32>, vector<8x8xf32> -> vector<8x8xf32>
    %cst_78 = arith.constant 0.0333333351 : f32
    %207 = vector.broadcast %cst_78 : f32 to vector<8x8xf32>
    %208 = arith.mulf %206, %207 : vector<8x8xf32>
    %209 = math.tanh %208 : vector<8x8xf32>
    %cst_79 = arith.constant 3.000000e+01 : f32
    %210 = vector.broadcast %cst_79 : f32 to vector<8x8xf32>
    %211 = arith.mulf %210, %209 : vector<8x8xf32>
    %cst_80 = arith.constant -3.40282347E+38 : f32
    %212 = vector.broadcast %cst_80 : f32 to vector<8x8xf32>
    %213 = arith.select %29, %211, %212 : vector<8x8xi1>, vector<8x8xf32>
    %cst_81 = arith.constant dense<0xFF800000> : vector<8xf32>
    %214 = vector.multi_reduction <maximumf>, %213, %cst_81 [1] : vector<8x8xf32> to vector<8xf32>
    %215 = vector.shape_cast %214 : vector<8xf32> to vector<8x1xf32>
    %216 = vector.broadcast %215 : vector<8x1xf32> to vector<8x8xf32>
    %217 = arith.subf %213, %216 : vector<8x8xf32>
    %218 = math.exp %217 : vector<8x8xf32>
    %cst_82 = arith.constant dense<0.000000e+00> : vector<8xf32>
    %219 = vector.multi_reduction <add>, %218, %cst_82 [1] : vector<8x8xf32> to vector<8xf32>
    %220 = vector.shape_cast %219 : vector<8xf32> to vector<8x1xf32>
    %221 = vector.broadcast %220 : vector<8x1xf32> to vector<8x8xf32>
    %222 = arith.divf %218, %221 : vector<8x8xf32>
    %cst_83 = arith.constant dense<0.000000e+00> : vector<8x8xf32>
    %223 = tpu.matmul %222, %205, %cst_83 {dimension_numbers = #tpu.dot_dimension_numbers<[1], [0], [0], [1], [0, 0, 1, 1], [], []>} : vector<8x8xf32>, vector<8x8xf32>, vector<8x8xf32> -> vector<8x8xf32>
    %224 = vector.extract_strided_slice %26 {offsets = [24, 0], sizes = [8, 32], strides = [1, 1]} : vector<32x32xf32> to vector<8x32xf32>
    %cst_84 = arith.constant dense<0.000000e+00> : vector<8x32xf32>
    %225 = tpu.matmul %223, %224, %cst_84 {dimension_numbers = #tpu.dot_dimension_numbers<[1], [0], [0], [1], [0, 0, 1, 1], [], []>} : vector<8x8xf32>, vector<8x32xf32>, vector<8x32xf32> -> vector<8x32xf32>
    %226 = arith.addf %202, %225 : vector<8x32xf32>
    %c1 = arith.constant 1 : index
    %c0_85 = arith.constant 0 : index
    %c0_86 = arith.constant 0 : index
    %227 = vector.load %arg7[%c1, %c0_85, %c0_86] : memref<2x8x32xf32, #tpu.memory_space<vmem>>, vector<1x8x32xf32>
    %228 = vector.shape_cast %227 : vector<1x8x32xf32> to vector<8x32xf32>
    %229 = vector.shape_cast %226 : vector<8x32xf32> to vector<1x8x32xf32>
    tpu.vector_store %arg7[%c1, %c0_85, %c0_86], %229 {strides = array<i32>} : memref<2x8x32xf32, #tpu.memory_space<vmem>>, vector<1x8x32xf32>,
    return
  }
  func.func @transform_0(%arg0: i32) -> (i32, i32, i32) {
    %c0_i32 = arith.constant 0 : i32
    %c0_i32_0 = arith.constant 0 : i32
    %c0_i32_1 = arith.constant 0 : i32
    %c0_i32_2 = arith.constant 0 : i32
    return %c0_i32, %c0_i32_0, %c0_i32_1 : i32, i32, i32
  }
  func.func @transform_1(%arg0: i32) -> (i32, i32) {
    %c0_i32 = arith.constant 0 : i32
    %c0_i32_0 = arith.constant 0 : i32
    %c0_i32_1 = arith.constant 0 : i32
    return %c0_i32, %c0_i32_0 : i32, i32
  }
  func.func @transform_2(%arg0: i32) -> (i32, i32) {
    %c0_i32 = arith.constant 0 : i32
    %c0_i32_0 = arith.constant 0 : i32
    %c0_i32_1 = arith.constant 0 : i32
    return %c0_i32, %c0_i32_0 : i32, i32
  }
  func.func @transform_3(%arg0: i32) -> (i32, i32, i32) {
    %c0_i32 = arith.constant 0 : i32
    %c0_i32_0 = arith.constant 0 : i32
    %c0_i32_1 = arith.constant 0 : i32
    %c0_i32_2 = arith.constant 0 : i32
    return %c0_i32, %c0_i32_0, %c0_i32_1 : i32, i32, i32
  }
  func.func @transform_4(%arg0: i32) -> (i32, i32, i32) {
    %c0_i32 = arith.constant 0 : i32
    %c0_i32_0 = arith.constant 0 : i32
    %c0_i32_1 = arith.constant 0 : i32
    %c0_i32_2 = arith.constant 0 : i32
    return %c0_i32, %c0_i32_0, %c0_i32_1 : i32, i32, i32
  }
  func.func @transform_5(%arg0: i32) -> (i32, i32, i32) {
    %c0_i32 = arith.constant 0 : i32
    %c0_i32_0 = arith.constant 0 : i32
    %c0_i32_1 = arith.constant 0 : i32
    %c0_i32_2 = arith.constant 0 : i32
    return %c0_i32, %c0_i32_0, %c0_i32_1 : i32, i32, i32
  }
  func.func @transform_6(%arg0: i32) -> (i32, i32, i32) {
    %c0_i32 = arith.constant 0 : i32
    %c0_i32_0 = arith.constant 0 : i32
    %c0_i32_1 = arith.constant 0 : i32
    %c0_i32_2 = arith.constant 0 : i32
    return %c0_i32, %c0_i32_0, %c0_i32_1 : i32, i32, i32
  }
}

</mosaic_0001>

<llo_original>
// kernel: tpu_custom_call.1
$region0: #{tpu_custom_call.1}
  #allocation0 [shape = 'u32[]', space=smem, size = 0x4, offset = 0x4, fixed_abs, tag = 'smem constant byte address 0x4 - core index']
  #allocation1 [shape = 'u32[144,128]{1,0:T(1,128)}', space=vmem, size = 0x12000, scoped, tag = 'internal scratch']
  %s0 = inlined_call_operand.hbm [shape: f32[2,8,32], index: 0, kind: input, shape index: {}]
  %s1 = inlined_call_operand.hbm [shape: f32[32,64], index: 1, kind: input, shape index: {}]
  %s2 = inlined_call_operand.hbm [shape: f32[32,32], index: 2, kind: input, shape index: {}]
  %s3 = inlined_call_operand.hbm [shape: f32[2,8,8], index: 3, kind: input, shape index: {}]
  %s4 = inlined_call_operand.hbm [shape: f32[2,8,8], index: 4, kind: input, shape index: {}]
  %s5 = inlined_call_operand.hbm [shape: f32[2,8,8], index: 5, kind: input, shape index: {}]
  %s6 = inlined_call_operand.hbm [shape: f32[2,8,32], index: 6, kind: output, shape index: {}]
  %s7 = sld [smem:[#allocation0]]
  $region58: #{tpu_custom_call.1} parent=0
    _
  %s9 = ssub.s32 1, %s7
  %s10 = scalar_select 0, %s9, %s7
  $region1: #{tpu_custom_call.1} parent=0
    #allocation2 [shape = 'u8[8192]{0}', space=vmem, size = 0x2000, scoped, tag = 'input window, operand 0, single buffered']
    #allocation3 [shape = 's32[1]{0}', space=sflag, size = 0x4, scoped, tag = 'scoped memory for tpu_custom_call.1']
    #allocation4 [shape = 's32[1]{0}', space=sflag, size = 0x4, scoped, tag = 'scoped memory for tpu_custom_call.1']
    #allocation5 [shape = 'u8[16384]{0}', space=vmem, size = 0x4000, scoped, tag = 'input window, operand 1, single buffered']
    #allocation6 [shape = 's32[1]{0}', space=sflag, size = 0x4, scoped, tag = 'scoped memory for tpu_custom_call.1']
    #allocation7 [shape = 'u8[16384]{0}', space=vmem, size = 0x4000, scoped, tag = 'input window, operand 2, single buffered']
    #allocation8 [shape = 'u8[8192]{0}', space=vmem, size = 0x2000, scoped, tag = 'input window, operand 3, single buffered']
    #allocation9 [shape = 's32[1]{0}', space=sflag, size = 0x4, scoped, tag = 'scoped memory for tpu_custom_call.1']
    #allocation10 [shape = 'u8[8192]{0}', space=vmem, size = 0x2000, scoped, tag = 'input window, operand 4, single buffered']
    #allocation11 [shape = 'u8[8192]{0}', space=vmem, size = 0x2000, scoped, tag = 'input window, operand 5, single buffered']
    #allocation12 [shape = 's32[1]{0}', space=sflag, size = 0x4, scoped, tag = 'scoped memory for tpu_custom_call.1']
    #allocation13 [shape = 'u8[8192]{0}', space=vmem, size = 0x2000, scoped, tag = 'output window, operand 0, single buffered']
    %11 = vsyncpa [#allocation3], 0
    %12 = vsyncpa [#allocation6], 0
    %13 = vsyncpa [#allocation9], 0
    %14 = vsyncpa [#allocation12], 0
    %15 = vsyncpa [#allocation4], 0
    // Predicated region
    $region2: #{tpu_custom_call.1} parent=1 // pred_check
      _
    $region3: #{tpu_custom_call.1} parent=1 // pred_check_branch
      %17 = sbr.rel (0) target = $region5
    $region4: #{tpu_custom_call.1} parent=1 // pred_region
      %s19 = ssub.s32 256, 256
      %20 = vsyncadd [#allocation3], %s19
      %s21 = sshll.u32 [#allocation2], 4
      %s22 = int_to_ptr.vmem [resolvable:$true] %s21
      %27 = dma.hbm_to_vmem [thread:$0]  %s0, 256, %s22, [#allocation3], 128, 128, 8
    $region5: #{tpu_custom_call.1} parent=1 // pred_fallthru
      _
    // Predicated region
    $region6: #{tpu_custom_call.1} parent=1 // pred_check
      _
    $region7: #{tpu_custom_call.1} parent=1 // pred_check_branch
      %29 = sbr.rel (0) target = $region9
    $region8: #{tpu_custom_call.1} parent=1 // pred_region
      %s31 = ssub.s32 512, 512
      %32 = vsyncadd [#allocation6], %s31
      %s33 = sshll.u32 [#allocation5], 4
      %s34 = int_to_ptr.vmem [resolvable:$true] %s33
      %39 = dma.hbm_to_vmem [thread:$0]  %s1, 512, %s34, [#allocation6], 128, 128, 8
    $region9: #{tpu_custom_call.1} parent=1 // pred_fallthru
      _
    // Predicated region
    $region10: #{tpu_custom_call.1} parent=1 // pred_check
      _
    $region11: #{tpu_custom_call.1} parent=1 // pred_check_branch
      %41 = sbr.rel (0) target = $region13
    $region12: #{tpu_custom_call.1} parent=1 // pred_region
      %s43 = ssub.s32 512, 512
      %44 = vsyncadd [#allocation6], %s43
      %s45 = sshll.u32 [#allocation7], 4
      %s46 = int_to_ptr.vmem [resolvable:$true] %s45
      %51 = dma.hbm_to_vmem [thread:$0]  %s2, 512, %s46, [#allocation6], 128, 128, 8
    $region13: #{tpu_custom_call.1} parent=1 // pred_fallthru
      _
    // Predicated region
    $region14: #{tpu_custom_call.1} parent=1 // pred_check
      _
    $region15: #{tpu_custom_call.1} parent=1 // pred_check_branch
      %53 = sbr.rel (0) target = $region17
    $region16: #{tpu_custom_call.1} parent=1 // pred_region
      %s55 = ssub.s32 256, 256
      %56 = vsyncadd [#allocation9], %s55
      %s57 = sshll.u32 [#allocation8], 4
      %s58 = int_to_ptr.vmem [resolvable:$true] %s57
      %63 = dma.hbm_to_vmem [thread:$0]  %s3, 256, %s58, [#allocation9], 128, 128, 8
    $region17: #{tpu_custom_call.1} parent=1 // pred_fallthru
      _
    // Predicated region
    $region18: #{tpu_custom_call.1} parent=1 // pred_check
      _
    $region19: #{tpu_custom_call.1} parent=1 // pred_check_branch
      %65 = sbr.rel (0) target = $region21
    $region20: #{tpu_custom_call.1} parent=1 // pred_region
      %s67 = ssub.s32 256, 256
      %68 = vsyncadd [#allocation9], %s67
      %s69 = sshll.u32 [#allocation10], 4
      %s70 = int_to_ptr.vmem [resolvable:$true] %s69
      %75 = dma.hbm_to_vmem [thread:$0]  %s4, 256, %s70, [#allocation9], 128, 128, 8
    $region21: #{tpu_custom_call.1} parent=1 // pred_fallthru
      _
    // Predicated region
    $region22: #{tpu_custom_call.1} parent=1 // pred_check
      _
    $region23: #{tpu_custom_call.1} parent=1 // pred_check_branch
      %77 = sbr.rel (0) target = $region25
    $region24: #{tpu_custom_call.1} parent=1 // pred_region
      %s79 = ssub.s32 256, 256
      %80 = vsyncadd [#allocation12], %s79
      %s81 = sshll.u32 [#allocation11], 4
      %s82 = int_to_ptr.vmem [resolvable:$true] %s81
      %87 = dma.hbm_to_vmem [thread:$0]  %s5, 256, %s82, [#allocation12], 128, 128, 8
    $region25: #{tpu_custom_call.1} parent=1 // pred_fallthru
      _
    // Predicated region
    $region26: #{tpu_custom_call.1} parent=1 // pred_check
      _
    $region27: #{tpu_custom_call.1} parent=1 // pred_check_branch
      %89 = sbr.rel (0) target = $region29
    $region28: #{tpu_custom_call.1} parent=1 // pred_region
      %90 = dma.done [#allocation3], 256
    $region29: #{tpu_custom_call.1} parent=1 // pred_fallthru
      _
    // Predicated region
    $region30: #{tpu_custom_call.1} parent=1 // pred_check
      _
    $region31: #{tpu_custom_call.1} parent=1 // pred_check_branch
      %92 = sbr.rel (0) target = $region33
    $region32: #{tpu_custom_call.1} parent=1 // pred_region
      %93 = dma.done [#allocation6], 512
    $region33: #{tpu_custom_call.1} parent=1 // pred_fallthru
      _
    // Predicated region
    $region34: #{tpu_custom_call.1} parent=1 // pred_check
      _
    $region35: #{tpu_custom_call.1} parent=1 // pred_check_branch
      %95 = sbr.rel (0) target = $region37
    $region36: #{tpu_custom_call.1} parent=1 // pred_region
      %96 = dma.done [#allocation6], 512
    $region37: #{tpu_custom_call.1} parent=1 // pred_fallthru
      _
    // Predicated region
    $region38: #{tpu_custom_call.1} parent=1 // pred_check
      _
    $region39: #{tpu_custom_call.1} parent=1 // pred_check_branch
      %98 = sbr.rel (0) target = $region41
    $region40: #{tpu_custom_call.1} parent=1 // pred_region
      %99 = dma.done [#allocation9], 256
    $region41: #{tpu_custom_call.1} parent=1 // pred_fallthru
      _
    // Predicated region
    $region42: #{tpu_custom_call.1} parent=1 // pred_check
      _
    $region43: #{tpu_custom_call.1} parent=1 // pred_check_branch
      %101 = sbr.rel (0) target = $region45
    $region44: #{tpu_custom_call.1} parent=1 // pred_region
      %102 = dma.done [#allocation9], 256
    $region45: #{tpu_custom_call.1} parent=1 // pred_fallthru
      _
    // Predicated region
    $region46: #{tpu_custom_call.1} parent=1 // pred_check
      _
    $region47: #{tpu_custom_call.1} parent=1 // pred_check_branch
      %104 = sbr.rel (0) target = $region49
    $region48: #{tpu_custom_call.1} parent=1 // pred_region
      %105 = dma.done [#allocation12], 256
    $region49: #{tpu_custom_call.1} parent=1 // pred_fallthru
      _
    %v106 = vld [vmem:[#allocation2] sm:$0xff]
    %v107 = vld [vmem:[#allocation2 + $0x8] sm:$0xff]
    %v108 = vld [vmem:[#allocation5] sm:$0xff]
    %v109 = vld [vmem:[#allocation5 + $0x8] sm:$0xff]
    %v110 = vld [vmem:[#allocation5 + $0x10] sm:$0xff]
    %v111 = vld [vmem:[#allocation5 + $0x18] sm:$0xff]
    %vm112 = vcmask 261120
    %v114 = vsel %vm112, %v106, 0
    %v117 = vsel %vm112, %v107, 0
    %119 = vmatprep.subr.mxu0 0.0
    %120 = vmatpush1.msra.mxu0 0.0
    %121 = vmatprep.subr.mxu0 0.0
    %122 = vmatpush1.msra.mxu0 0.0
    %123 = vmatprep.subr.mxu0 0.0
    %124 = vmatpush1.msra.mxu0 0.0
    %125 = vmatprep.subr.mxu0 0.0
    %126 = vmatpush1.msra.mxu0 0.0
    %127 = vmatprep.subr.mxu0 0.0
    %128 = vmatpush1.msra.mxu0 0.0
    %129 = vmatprep.subr.mxu0 0.0
    %130 = vmatpush1.msra.mxu0 0.0
    %131 = vmatprep.subr.mxu0 0.0
    %132 = vmatpush1.msra.mxu0 0.0
    %133 = vmatprep.subr.mxu0 0.0
    %134 = vmatpush1.msra.mxu0 0.0
    %135 = vmatprep.subr.mxu0 0.0
    %136 = vmatpush1.msra.mxu0 0.0
    %137 = vmatprep.subr.mxu0 0.0
    %138 = vmatpush1.msra.mxu0 0.0
    %139 = vmatprep.subr.mxu0 0.0
    %140 = vmatpush1.msra.mxu0 0.0
    %141 = vmatprep.subr.mxu0 0.0
    %142 = vmatpush1.msra.mxu0 0.0
    %143 = vmatprep.subr.mxu0 0.0
    %144 = vmatpush1.msra.mxu0 %v111
    %145 = vmatprep.subr.mxu0 0.0
    %146 = vmatpush1.msra.mxu0 %v110
    %147 = vmatprep.subr.mxu0 0.0
    %148 = vmatpush1.msra.mxu0 %v109
    %149 = vmatprep.subr.mxu0 0.0
    %150 = vmatpush1.msra.mxu0 %v108
    %151 = vmatprep.subr.mxu0 0.0
    %152 = vmatpush2.msra.mxu0 0.0
    %153 = vmatprep.subr.mxu0 0.0
    %154 = vmatpush2.msra.mxu0 0.0
    %155 = vmatprep.subr.mxu0 0.0
    %156 = vmatpush2.msra.mxu0 0.0
    %157 = vmatprep.subr.mxu0 0.0
    %158 = vmatpush2.msra.mxu0 0.0
    %159 = vmatprep.subr.mxu0 0.0
    %160 = vmatpush2.msra.mxu0 0.0
    %161 = vmatprep.subr.mxu0 0.0
    %162 = vmatpush2.msra.mxu0 0.0
    %163 = vmatprep.subr.mxu0 0.0
    %164 = vmatpush2.msra.mxu0 0.0
    %165 = vmatprep.subr.mxu0 0.0
    %166 = vmatpush2.msra.mxu0 0.0
    %167 = vmatprep.subr.mxu0 0.0
    %168 = vmatpush2.msra.mxu0 0.0
    %169 = vmatprep.subr.mxu0 0.0
    %170 = vmatpush2.msra.mxu0 0.0
    %171 = vmatprep.subr.mxu0 0.0
    %172 = vmatpush2.msra.mxu0 0.0
    %173 = vmatprep.subr.mxu0 0.0
    %174 = vmatpush2.msra.mxu0 0.0
    %175 = vmatprep.subr.mxu0 0.0
    %176 = vmatpush2.msra.mxu0 0.0
    %177 = vmatprep.subr.mxu0 0.0
    %178 = vmatpush2.msra.mxu0 0.0
    %179 = vmatprep.subr.mxu0 0.0
    %180 = vmatpush2.msra.mxu0 0.0
    %181 = vmatprep.subr.mxu0 0.0
    %182 = vmatpush2.msra.mxu0 0.0
    %183 = vmatprep.mubr.f32.mxu0 0.0
    %184 = vmatmul.mubr.f32.gmra.mxu0 %v114
    %v185 = vpop.f32.mrf.mxu0
    %v186 = vadd.f32 0.0, %v185
    %v187 = vpop.f32.mrf.mxu0
    %188 = vmatprep.mubr.f32.mxu0 0.0
    %189 = vmatmul.mubr.f32.gmra.mxu0 %v117
    %v190 = vpop.f32.mrf.mxu0
    %v191 = vadd.f32 0.0, %v190
    %v192 = vpop.f32.mrf.mxu0
    %193 = vdwg.mxu0
    %v194 = vld [vmem:[#allocation8] sm:$0xff]
    %v195 = vld [vmem:[#allocation8 + $0x8] sm:$0xff]
    %v196 = vld [vmem:[#allocation10] sm:$0xff]
    %v197 = vld [vmem:[#allocation10 + $0x8] sm:$0xff]
    %v198 = vld [vmem:[#allocation11] sm:$0xff]
    %v199 = vld [vmem:[#allocation11 + $0x8] sm:$0xff]
    %202 = vrot.lane.b32.xlu0 %v194, 8
    %v203 = vpop.permute.xlu0 %202
    %204 = vrot.lane.b32.xlu0 %v195, 8
    %v205 = vpop.permute.xlu0 %204
    %208 = vrot.lane.b32.xlu0 %v194, 16
    %v209 = vpop.permute.xlu0 %208
    %210 = vrot.lane.b32.xlu0 %v195, 16
    %v211 = vpop.permute.xlu0 %210
    %214 = vrot.lane.b32.xlu0 %v194, 24
    %v215 = vpop.permute.xlu0 %214
    %216 = vrot.lane.b32.xlu0 %v195, 24
    %v217 = vpop.permute.xlu0 %216
    %220 = vrot.lane.b32.xlu0 %v194, 32
    %v221 = vpop.permute.xlu0 %220
    %222 = vrot.lane.b32.xlu0 %v195, 32
    %v223 = vpop.permute.xlu0 %222
    %226 = vrot.lane.b32.xlu0 %v194, 40
    %v227 = vpop.permute.xlu0 %226
    %228 = vrot.lane.b32.xlu0 %v195, 40
    %v229 = vpop.permute.xlu0 %228
    %vm232 = vcmask 64512
    %v233 = vsel %vm232, %v194, %v203
    %v234 = vsel %vm232, %v195, %v205
    %vm235 = vcmask 130048
    %v236 = vsel %vm235, %v233, %v209
    %v237 = vsel %vm235, %v234, %v211
    %vm238 = vcmask 195584
    %v239 = vsel %vm238, %v236, %v215
    %v240 = vsel %vm238, %v237, %v217
    %v241 = vsel %vm112, %v239, %v221
    %v242 = vsel %vm112, %v240, %v223
    %vm243 = vcmask 326656
    %v244 = vsel %vm243, %v241, %v227
    %v245 = vsel %vm243, %v242, %v229
    %248 = vrot.lane.b32.xlu0 %v196, 8
    %v249 = vpop.permute.xlu0 %248
    %250 = vrot.lane.b32.xlu0 %v197, 8
    %v251 = vpop.permute.xlu0 %250
    %254 = vrot.lane.b32.xlu0 %v196, 16
    %v255 = vpop.permute.xlu0 %254
    %256 = vrot.lane.b32.xlu0 %v197, 16
    %v257 = vpop.permute.xlu0 %256
    %260 = vrot.lane.b32.xlu0 %v196, 24
    %v261 = vpop.permute.xlu0 %260
    %262 = vrot.lane.b32.xlu0 %v197, 24
    %v263 = vpop.permute.xlu0 %262
    %266 = vrot.lane.b32.xlu0 %v196, 32
    %v267 = vpop.permute.xlu0 %266
    %268 = vrot.lane.b32.xlu0 %v197, 32
    %v269 = vpop.permute.xlu0 %268
    %272 = vrot.lane.b32.xlu0 %v196, 40
    %v273 = vpop.permute.xlu0 %272
    %274 = vrot.lane.b32.xlu0 %v197, 40
    %v275 = vpop.permute.xlu0 %274
    %v278 = vsel %vm232, %v196, %v249
    %v279 = vsel %vm232, %v197, %v251
    %v280 = vsel %vm235, %v278, %v255
    %v281 = vsel %vm235, %v279, %v257
    %v282 = vsel %vm238, %v280, %v261
    %v283 = vsel %vm238, %v281, %v263
    %v284 = vsel %vm112, %v282, %v267
    %v285 = vsel %vm112, %v283, %v269
    %v286 = vsel %vm243, %v284, %v273
    %v287 = vsel %vm243, %v285, %v275
    %290 = vrot.lane.b32.xlu0 %v198, 8
    %v291 = vpop.permute.xlu0 %290
    %292 = vrot.lane.b32.xlu0 %v199, 8
    %v293 = vpop.permute.xlu0 %292
    %296 = vrot.lane.b32.xlu0 %v198, 16
    %v297 = vpop.permute.xlu0 %296
    %298 = vrot.lane.b32.xlu0 %v199, 16
    %v299 = vpop.permute.xlu0 %298
    %302 = vrot.lane.b32.xlu0 %v198, 24
    %v303 = vpop.permute.xlu0 %302
    %304 = vrot.lane.b32.xlu0 %v199, 24
    %v305 = vpop.permute.xlu0 %304
    %308 = vrot.lane.b32.xlu0 %v198, 32
    %v309 = vpop.permute.xlu0 %308
    %310 = vrot.lane.b32.xlu0 %v199, 32
    %v311 = vpop.permute.xlu0 %310
    %314 = vrot.lane.b32.xlu0 %v198, 40
    %v315 = vpop.permute.xlu0 %314
    %316 = vrot.lane.b32.xlu0 %v199, 40
    %v317 = vpop.permute.xlu0 %316
    %v320 = vsel %vm232, %v198, %v291
    %v321 = vsel %vm232, %v199, %v293
    %v322 = vsel %vm235, %v320, %v297
    %v323 = vsel %vm235, %v321, %v299
    %v324 = vsel %vm238, %v322, %v303
    %v325 = vsel %vm238, %v323, %v305
    %v326 = vsel %vm112, %v324, %v309
    %v327 = vsel %vm112, %v325, %v311
    %v328 = vsel %vm243, %v326, %v315
    %v329 = vsel %vm243, %v327, %v317
    %vm330 = vcmask 1047936
    %331 = vrot.lane.b32.xlu0 %v186, 48
    %v332 = vpop.permute.xlu0 %331
    %v333 = vsel %vm330, %v332, %v186
    %334 = vrot.lane.b32.xlu0 %v191, 48
    %v335 = vpop.permute.xlu0 %334
    %v336 = vsel %vm330, %v335, %v191
    %337 = vrot.lane.b32.xlu0 %v333, 48
    %v338 = vpop.permute.xlu0 %337
    %339 = vrot.lane.b32.xlu0 %v336, 48
    %v340 = vpop.permute.xlu0 %339
    %v341 = vsel %vm330, %v338, %v186
    %v342 = vsel %vm330, %v340, %v191
    %v343 = vmul.f32 %v186, %v244
    %v344 = vmul.f32 %v191, %v245
    %347 = vrot.lane.b32.xlu0 %v286, 44
    %v348 = vpop.permute.xlu0 %347
    %349 = vrot.lane.b32.xlu0 %v287, 44
    %v350 = vpop.permute.xlu0 %349
    %v353 = vmul.f32 %v341, %v348
    %v354 = vmul.f32 %v342, %v350
    %357 = vrot.lane.b32.xlu0 %v353, 84
    %v358 = vpop.permute.xlu0 %357
    %359 = vrot.lane.b32.xlu0 %v354, 84
    %v360 = vpop.permute.xlu0 %359
    %v363 = vadd.f32 %v343, %v358
    %v364 = vadd.f32 %v344, %v360
    %367 = vrot.lane.b32.xlu0 %v328, 4
    %v368 = vpop.permute.xlu0 %367
    %369 = vrot.lane.b32.xlu0 %v329, 4
    %v370 = vpop.permute.xlu0 %369
    %v373 = vmul.f32 %v341, %v368
    %v374 = vmul.f32 %v342, %v370
    %377 = vrot.lane.b32.xlu0 %v373, 124
    %v378 = vpop.permute.xlu0 %377
    %379 = vrot.lane.b32.xlu0 %v374, 124
    %v380 = vpop.permute.xlu0 %379
    %v383 = vadd.f32 %v363, %v378
    %v384 = vadd.f32 %v364, %v380
    %v385 = vmul.f32 %v383, 0.08
    %v386 = vmul.f32 %v384, 0.08
    %v387 = vld [vmem:[#allocation7] sm:$0xff]
    %v388 = vld [vmem:[#allocation7 + $0x8] sm:$0xff]
    %v389 = vld [vmem:[#allocation7 + $0x10] sm:$0xff]
    %v390 = vld [vmem:[#allocation7 + $0x18] sm:$0xff]
    %v391 = vlaneseq
    %v392 = vshrl.u32 %v391, 7
    %v393 = vlaneseq
    %v394 = vand.u32 %v393, 127
    %vm395 = vcmp.le.s32.totalorder %v394, %v392
    %397 = vrot.lane.b32.xlu0 %v383, 96
    %v398 = vpop.permute.xlu0 %397
    %v400 = vsel %vm232, %v385, 0
    %v402 = vsel %vm232, %v398, 0
    %404 = vmatprep.subr.mxu0 0.0
    %405 = vmatpush1.xpose.msra.mxu0 0.0
    %406 = vmatprep.subr.mxu0 0.0
    %407 = vmatpush1.xpose.msra.mxu0 0.0
    %408 = vmatprep.subr.mxu0 0.0
    %409 = vmatpush1.xpose.msra.mxu0 0.0
    %410 = vmatprep.subr.mxu0 0.0
    %411 = vmatpush1.xpose.msra.mxu0 0.0
    %412 = vmatprep.subr.mxu0 0.0
    %413 = vmatpush1.xpose.msra.mxu0 0.0
    %414 = vmatprep.subr.mxu0 0.0
    %415 = vmatpush1.xpose.msra.mxu0 0.0
    %416 = vmatprep.subr.mxu0 0.0
    %417 = vmatpush1.xpose.msra.mxu0 0.0
    %418 = vmatprep.subr.mxu0 0.0
    %419 = vmatpush1.xpose.msra.mxu0 0.0
    %420 = vmatprep.subr.mxu0 0.0
    %421 = vmatpush1.xpose.msra.mxu0 0.0
    %422 = vmatprep.subr.mxu0 0.0
    %423 = vmatpush1.xpose.msra.mxu0 0.0
    %424 = vmatprep.subr.mxu0 0.0
    %425 = vmatpush1.xpose.msra.mxu0 0.0
    %426 = vmatprep.subr.mxu0 0.0
    %427 = vmatpush1.xpose.msra.mxu0 0.0
    %428 = vmatprep.subr.mxu0 0.0
    %429 = vmatpush1.xpose.msra.mxu0 0.0
    %430 = vmatprep.subr.mxu0 0.0
    %431 = vmatpush1.xpose.msra.mxu0 0.0
    %432 = vmatprep.subr.mxu0 0.0
    %433 = vmatpush1.xpose.msra.mxu0 0.0
    %434 = vmatprep.subr.mxu0 0.0
    %435 = vmatpush1.xpose.msra.mxu0 %v402
    %436 = vmatprep.subr.mxu0 0.0
    %437 = vmatpush2.xpose.msra.mxu0 0.0
    %438 = vmatprep.subr.mxu0 0.0
    %439 = vmatpush2.xpose.msra.mxu0 0.0
    %440 = vmatprep.subr.mxu0 0.0
    %441 = vmatpush2.xpose.msra.mxu0 0.0
    %442 = vmatprep.subr.mxu0 0.0
    %443 = vmatpush2.xpose.msra.mxu0 0.0
    %444 = vmatprep.subr.mxu0 0.0
    %445 = vmatpush2.xpose.msra.mxu0 0.0
    %446 = vmatprep.subr.mxu0 0.0
    %447 = vmatpush2.xpose.msra.mxu0 0.0
    %448 = vmatprep.subr.mxu0 0.0
    %449 = vmatpush2.xpose.msra.mxu0 0.0
    %450 = vmatprep.subr.mxu0 0.0
    %451 = vmatpush2.xpose.msra.mxu0 0.0
    %452 = vmatprep.subr.mxu0 0.0
    %453 = vmatpush2.xpose.msra.mxu0 0.0
    %454 = vmatprep.subr.mxu0 0.0
    %455 = vmatpush2.xpose.msra.mxu0 0.0
    %456 = vmatprep.subr.mxu0 0.0
    %457 = vmatpush2.xpose.msra.mxu0 0.0
    %458 = vmatprep.subr.mxu0 0.0
    %459 = vmatpush2.xpose.msra.mxu0 0.0
    %460 = vmatprep.subr.mxu0 0.0
    %461 = vmatpush2.xpose.msra.mxu0 0.0
    %462 = vmatprep.subr.mxu0 0.0
    %463 = vmatpush2.xpose.msra.mxu0 0.0
    %464 = vmatprep.subr.mxu0 0.0
    %465 = vmatpush2.xpose.msra.mxu0 0.0
    %466 = vmatprep.subr.mxu0 0.0
    %467 = vmatpush2.xpose.msra.mxu0 0.0
    %468 = vmatprep.mubr.f32.mxu0 0.0
    %469 = vmatmul.mubr.f32.gmra.mxu0 %v400
    %v470 = vpop.f32.mrf.mxu0
    %v471 = vadd.f32 0.0, %v470
    %v472 = vpop.f32.mrf.mxu0
    %473 = vdwg.mxu0
    %v474 = vmul.f32 %v471, 0.033333335
    %v475 = vtanh.pop %v474
    %v476 = vmul.f32 %v475, 30.0
    %v477 = vsel %vm395, %v476, -3.4028235e+38
    %v478 = vsel %vm232, %v477, -inf
    %479 = vmax.xlane.f32.xlu0 %v478
    %v480 = vpop.xlane.xlu0 %479
    %v481 = vsub.f32 %v477, %v480
    %v482 = vmul.f32 %v481, 1.442695
    %v483 = vpow.pop %v482
    %v484 = vsel %vm232, %v483, 0.0
    %485 = vadd.xlane.f32.xlu0 %v484
    %v486 = vpop.xlane.xlu0 %485
    %v487 = vrcp.pop %v486
    %v488 = vmul.f32 %v483, %v487
    %490 = vrot.lane.b32.xlu0 %v186, 80
    %v491 = vpop.permute.xlu0 %490
    %v494 = vsel %vm232, %v488, 0
    %496 = vmatprep.subr.mxu0 0.0
    %497 = vmatpush1.msra.mxu0 0.0
    %498 = vmatprep.subr.mxu0 0.0
    %499 = vmatpush1.msra.mxu0 0.0
    %500 = vmatprep.subr.mxu0 0.0
    %501 = vmatpush1.msra.mxu0 0.0
    %502 = vmatprep.subr.mxu0 0.0
    %503 = vmatpush1.msra.mxu0 0.0
    %504 = vmatprep.subr.mxu0 0.0
    %505 = vmatpush1.msra.mxu0 0.0
    %506 = vmatprep.subr.mxu0 0.0
    %507 = vmatpush1.msra.mxu0 0.0
    %508 = vmatprep.subr.mxu0 0.0
    %509 = vmatpush1.msra.mxu0 0.0
    %510 = vmatprep.subr.mxu0 0.0
    %511 = vmatpush1.msra.mxu0 0.0
    %512 = vmatprep.subr.mxu0 0.0
    %513 = vmatpush1.msra.mxu0 0.0
    %514 = vmatprep.subr.mxu0 0.0
    %515 = vmatpush1.msra.mxu0 0.0
    %516 = vmatprep.subr.mxu0 0.0
    %517 = vmatpush1.msra.mxu0 0.0
    %518 = vmatprep.subr.mxu0 0.0
    %519 = vmatpush1.msra.mxu0 0.0
    %520 = vmatprep.subr.mxu0 0.0
    %521 = vmatpush1.msra.mxu0 0.0
    %522 = vmatprep.subr.mxu0 0.0
    %523 = vmatpush1.msra.mxu0 0.0
    %524 = vmatprep.subr.mxu0 0.0
    %525 = vmatpush1.msra.mxu0 0.0
    %526 = vmatprep.subr.mxu0 0.0
    %527 = vmatpush1.msra.mxu0 %v491
    %528 = vmatprep.subr.mxu0 0.0
    %529 = vmatpush2.msra.mxu0 0.0
    %530 = vmatprep.subr.mxu0 0.0
    %531 = vmatpush2.msra.mxu0 0.0
    %532 = vmatprep.subr.mxu0 0.0
    %533 = vmatpush2.msra.mxu0 0.0
    %534 = vmatprep.subr.mxu0 0.0
    %535 = vmatpush2.msra.mxu0 0.0
    %536 = vmatprep.subr.mxu0 0.0
    %537 = vmatpush2.msra.mxu0 0.0
    %538 = vmatprep.subr.mxu0 0.0
    %539 = vmatpush2.msra.mxu0 0.0
    %540 = vmatprep.subr.mxu0 0.0
    %541 = vmatpush2.msra.mxu0 0.0
    %542 = vmatprep.subr.mxu0 0.0
    %543 = vmatpush2.msra.mxu0 0.0
    %544 = vmatprep.subr.mxu0 0.0
    %545 = vmatpush2.msra.mxu0 0.0
    %546 = vmatprep.subr.mxu0 0.0
    %547 = vmatpush2.msra.mxu0 0.0
    %548 = vmatprep.subr.mxu0 0.0
    %549 = vmatpush2.msra.mxu0 0.0
    %550 = vmatprep.subr.mxu0 0.0
    %551 = vmatpush2.msra.mxu0 0.0
    %552 = vmatprep.subr.mxu0 0.0
    %553 = vmatpush2.msra.mxu0 0.0
    %554 = vmatprep.subr.mxu0 0.0
    %555 = vmatpush2.msra.mxu0 0.0
    %556 = vmatprep.subr.mxu0 0.0
    %557 = vmatpush2.msra.mxu0 0.0
    %558 = vmatprep.subr.mxu0 0.0
    %559 = vmatpush2.msra.mxu0 0.0
    %560 = vmatprep.mubr.f32.mxu0 0.0
    %561 = vmatmul.mubr.f32.gmra.mxu0 %v494
    %v562 = vpop.f32.mrf.mxu0
    %v563 = vadd.f32 0.0, %v562
    %v564 = vpop.f32.mrf.mxu0
    %565 = vdwg.mxu0
    %566 = vrot.lane.b32.xlu0 %v385, 120
    %v567 = vpop.permute.xlu0 %566
    %v568 = vsel %vm232, %v567, 0
    %570 = vmatprep.subr.mxu0 0.0
    %571 = vmatpush1.xpose.msra.mxu0 0.0
    %572 = vmatprep.subr.mxu0 0.0
    %573 = vmatpush1.xpose.msra.mxu0 0.0
    %574 = vmatprep.subr.mxu0 0.0
    %575 = vmatpush1.xpose.msra.mxu0 0.0
    %576 = vmatprep.subr.mxu0 0.0
    %577 = vmatpush1.xpose.msra.mxu0 0.0
    %578 = vmatprep.subr.mxu0 0.0
    %579 = vmatpush1.xpose.msra.mxu0 0.0
    %580 = vmatprep.subr.mxu0 0.0
    %581 = vmatpush1.xpose.msra.mxu0 0.0
    %582 = vmatprep.subr.mxu0 0.0
    %583 = vmatpush1.xpose.msra.mxu0 0.0
    %584 = vmatprep.subr.mxu0 0.0
    %585 = vmatpush1.xpose.msra.mxu0 0.0
    %586 = vmatprep.subr.mxu0 0.0
    %587 = vmatpush1.xpose.msra.mxu0 0.0
    %588 = vmatprep.subr.mxu0 0.0
    %589 = vmatpush1.xpose.msra.mxu0 0.0
    %590 = vmatprep.subr.mxu0 0.0
    %591 = vmatpush1.xpose.msra.mxu0 0.0
    %592 = vmatprep.subr.mxu0 0.0
    %593 = vmatpush1.xpose.msra.mxu0 0.0
    %594 = vmatprep.subr.mxu0 0.0
    %595 = vmatpush1.xpose.msra.mxu0 0.0
    %596 = vmatprep.subr.mxu0 0.0
    %597 = vmatpush1.xpose.msra.mxu0 0.0
    %598 = vmatprep.subr.mxu0 0.0
    %599 = vmatpush1.xpose.msra.mxu0 0.0
    %600 = vmatprep.subr.mxu0 0.0
    %601 = vmatpush1.xpose.msra.mxu0 %v402
    %602 = vmatprep.subr.mxu0 0.0
    %603 = vmatpush2.xpose.msra.mxu0 0.0
    %604 = vmatprep.subr.mxu0 0.0
    %605 = vmatpush2.xpose.msra.mxu0 0.0
    %606 = vmatprep.subr.mxu0 0.0
    %607 = vmatpush2.xpose.msra.mxu0 0.0
    %608 = vmatprep.subr.mxu0 0.0
    %609 = vmatpush2.xpose.msra.mxu0 0.0
    %610 = vmatprep.subr.mxu0 0.0
    %611 = vmatpush2.xpose.msra.mxu0 0.0
    %612 = vmatprep.subr.mxu0 0.0
    %613 = vmatpush2.xpose.msra.mxu0 0.0
    %614 = vmatprep.subr.mxu0 0.0
    %615 = vmatpush2.xpose.msra.mxu0 0.0
    %616 = vmatprep.subr.mxu0 0.0
    %617 = vmatpush2.xpose.msra.mxu0 0.0
    %618 = vmatprep.subr.mxu0 0.0
    %619 = vmatpush2.xpose.msra.mxu0 0.0
    %620 = vmatprep.subr.mxu0 0.0
    %621 = vmatpush2.xpose.msra.mxu0 0.0
    %622 = vmatprep.subr.mxu0 0.0
    %623 = vmatpush2.xpose.msra.mxu0 0.0
    %624 = vmatprep.subr.mxu0 0.0
    %625 = vmatpush2.xpose.msra.mxu0 0.0
    %626 = vmatprep.subr.mxu0 0.0
    %627 = vmatpush2.xpose.msra.mxu0 0.0
    %628 = vmatprep.subr.mxu0 0.0
    %629 = vmatpush2.xpose.msra.mxu0 0.0
    %630 = vmatprep.subr.mxu0 0.0
    %631 = vmatpush2.xpose.msra.mxu0 0.0
    %632 = vmatprep.subr.mxu0 0.0
    %633 = vmatpush2.xpose.msra.mxu0 0.0
    %634 = vmatprep.mubr.f32.mxu0 0.0
    %635 = vmatmul.mubr.f32.gmra.mxu0 %v568
    %v636 = vpop.f32.mrf.mxu0
    %v637 = vadd.f32 0.0, %v636
    %v638 = vpop.f32.mrf.mxu0
    %639 = vdwg.mxu0
    %v640 = vmul.f32 %v637, 0.033333335
    %v641 = vtanh.pop %v640
    %v642 = vmul.f32 %v641, 30.0
    %v643 = vsel %vm395, %v642, -3.4028235e+38
    %v644 = vsel %vm232, %v643, -inf
    %645 = vmax.xlane.f32.xlu0 %v644
    %v646 = vpop.xlane.xlu0 %645
    %v647 = vsub.f32 %v643, %v646
    %v648 = vmul.f32 %v647, 1.442695
    %v649 = vpow.pop %v648
    %v650 = vsel %vm232, %v649, 0.0
    %651 = vadd.xlane.f32.xlu0 %v650
    %v652 = vpop.xlane.xlu0 %651
    %v653 = vrcp.pop %v652
    %v654 = vmul.f32 %v649, %v653
    %v656 = vsel %vm232, %v654, 0
    %658 = vmatprep.subr.mxu0 0.0
    %659 = vmatpush1.msra.mxu0 0.0
    %660 = vmatprep.subr.mxu0 0.0
    %661 = vmatpush1.msra.mxu0 0.0
    %662 = vmatprep.subr.mxu0 0.0
    %663 = vmatpush1.msra.mxu0 0.0
    %664 = vmatprep.subr.mxu0 0.0
    %665 = vmatpush1.msra.mxu0 0.0
    %666 = vmatprep.subr.mxu0 0.0
    %667 = vmatpush1.msra.mxu0 0.0
    %668 = vmatprep.subr.mxu0 0.0
    %669 = vmatpush1.msra.mxu0 0.0
    %670 = vmatprep.subr.mxu0 0.0
    %671 = vmatpush1.msra.mxu0 0.0
    %672 = vmatprep.subr.mxu0 0.0
    %673 = vmatpush1.msra.mxu0 0.0
    %674 = vmatprep.subr.mxu0 0.0
    %675 = vmatpush1.msra.mxu0 0.0
    %676 = vmatprep.subr.mxu0 0.0
    %677 = vmatpush1.msra.mxu0 0.0
    %678 = vmatprep.subr.mxu0 0.0
    %679 = vmatpush1.msra.mxu0 0.0
    %680 = vmatprep.subr.mxu0 0.0
    %681 = vmatpush1.msra.mxu0 0.0
    %682 = vmatprep.subr.mxu0 0.0
    %683 = vmatpush1.msra.mxu0 0.0
    %684 = vmatprep.subr.mxu0 0.0
    %685 = vmatpush1.msra.mxu0 0.0
    %686 = vmatprep.subr.mxu0 0.0
    %687 = vmatpush1.msra.mxu0 0.0
    %688 = vmatprep.subr.mxu0 0.0
    %689 = vmatpush1.msra.mxu0 %v491
    %690 = vmatprep.subr.mxu0 0.0
    %691 = vmatpush2.msra.mxu0 0.0
    %692 = vmatprep.subr.mxu0 0.0
    %693 = vmatpush2.msra.mxu0 0.0
    %694 = vmatprep.subr.mxu0 0.0
    %695 = vmatpush2.msra.mxu0 0.0
    %696 = vmatprep.subr.mxu0 0.0
    %697 = vmatpush2.msra.mxu0 0.0
    %698 = vmatprep.subr.mxu0 0.0
    %699 = vmatpush2.msra.mxu0 0.0
    %700 = vmatprep.subr.mxu0 0.0
    %701 = vmatpush2.msra.mxu0 0.0
    %702 = vmatprep.subr.mxu0 0.0
    %703 = vmatpush2.msra.mxu0 0.0
    %704 = vmatprep.subr.mxu0 0.0
    %705 = vmatpush2.msra.mxu0 0.0
    %706 = vmatprep.subr.mxu0 0.0
    %707 = vmatpush2.msra.mxu0 0.0
    %708 = vmatprep.subr.mxu0 0.0
    %709 = vmatpush2.msra.mxu0 0.0
    %710 = vmatprep.subr.mxu0 0.0
    %711 = vmatpush2.msra.mxu0 0.0
    %712 = vmatprep.subr.mxu0 0.0
    %713 = vmatpush2.msra.mxu0 0.0
    %714 = vmatprep.subr.mxu0 0.0
    %715 = vmatpush2.msra.mxu0 0.0
    %716 = vmatprep.subr.mxu0 0.0
    %717 = vmatpush2.msra.mxu0 0.0
    %718 = vmatprep.subr.mxu0 0.0
    %719 = vmatpush2.msra.mxu0 0.0
    %720 = vmatprep.subr.mxu0 0.0
    %721 = vmatpush2.msra.mxu0 0.0
    %722 = vmatprep.mubr.f32.mxu0 0.0
    %723 = vmatmul.mubr.f32.gmra.mxu0 %v656
    %v724 = vpop.f32.mrf.mxu0
    %v725 = vadd.f32 0.0, %v724
    %v726 = vpop.f32.mrf.mxu0
    %727 = vdwg.mxu0
    %v729 = vsel %vm232, %v725, 0
    %731 = vmatprep.subr.mxu0 0.0
    %732 = vmatpush1.msra.mxu0 0.0
    %733 = vmatprep.subr.mxu0 0.0
    %734 = vmatpush1.msra.mxu0 0.0
    %735 = vmatprep.subr.mxu0 0.0
    %736 = vmatpush1.msra.mxu0 0.0
    %737 = vmatprep.subr.mxu0 0.0
    %738 = vmatpush1.msra.mxu0 0.0
    %739 = vmatprep.subr.mxu0 0.0
    %740 = vmatpush1.msra.mxu0 0.0
    %741 = vmatprep.subr.mxu0 0.0
    %742 = vmatpush1.msra.mxu0 0.0
    %743 = vmatprep.subr.mxu0 0.0
    %744 = vmatpush1.msra.mxu0 0.0
    %745 = vmatprep.subr.mxu0 0.0
    %746 = vmatpush1.msra.mxu0 0.0
    %747 = vmatprep.subr.mxu0 0.0
    %748 = vmatpush1.msra.mxu0 0.0
    %749 = vmatprep.subr.mxu0 0.0
    %750 = vmatpush1.msra.mxu0 0.0
    %751 = vmatprep.subr.mxu0 0.0
    %752 = vmatpush1.msra.mxu0 0.0
    %753 = vmatprep.subr.mxu0 0.0
    %754 = vmatpush1.msra.mxu0 0.0
    %755 = vmatprep.subr.mxu0 0.0
    %756 = vmatpush1.msra.mxu0 0.0
    %757 = vmatprep.subr.mxu0 0.0
    %758 = vmatpush1.msra.mxu0 0.0
    %759 = vmatprep.subr.mxu0 0.0
    %760 = vmatpush1.msra.mxu0 0.0
    %761 = vmatprep.subr.mxu0 0.0
    %762 = vmatpush1.msra.mxu0 %v388
    %763 = vmatprep.subr.mxu0 0.0
    %764 = vmatpush2.msra.mxu0 0.0
    %765 = vmatprep.subr.mxu0 0.0
    %766 = vmatpush2.msra.mxu0 0.0
    %767 = vmatprep.subr.mxu0 0.0
    %768 = vmatpush2.msra.mxu0 0.0
    %769 = vmatprep.subr.mxu0 0.0
    %770 = vmatpush2.msra.mxu0 0.0
    %771 = vmatprep.subr.mxu0 0.0
    %772 = vmatpush2.msra.mxu0 0.0
    %773 = vmatprep.subr.mxu0 0.0
    %774 = vmatpush2.msra.mxu0 0.0
    %775 = vmatprep.subr.mxu0 0.0
    %776 = vmatpush2.msra.mxu0 0.0
    %777 = vmatprep.subr.mxu0 0.0
    %778 = vmatpush2.msra.mxu0 0.0
    %779 = vmatprep.subr.mxu0 0.0
    %780 = vmatpush2.msra.mxu0 0.0
    %781 = vmatprep.subr.mxu0 0.0
    %782 = vmatpush2.msra.mxu0 0.0
    %783 = vmatprep.subr.mxu0 0.0
    %784 = vmatpush2.msra.mxu0 0.0
    %785 = vmatprep.subr.mxu0 0.0
    %786 = vmatpush2.msra.mxu0 0.0
    %787 = vmatprep.subr.mxu0 0.0
    %788 = vmatpush2.msra.mxu0 0.0
    %789 = vmatprep.subr.mxu0 0.0
    %790 = vmatpush2.msra.mxu0 0.0
    %791 = vmatprep.subr.mxu0 0.0
    %792 = vmatpush2.msra.mxu0 0.0
    %793 = vmatprep.subr.mxu0 0.0
    %794 = vmatpush2.msra.mxu0 0.0
    %795 = vmatprep.mubr.f32.mxu0 0.0
    %796 = vmatmul.mubr.f32.gmra.mxu0 %v729
    %v797 = vpop.f32.mrf.mxu0
    %v798 = vadd.f32 0.0, %v797
    %v799 = vpop.f32.mrf.mxu0
    %800 = vdwg.mxu0
    %v802 = vsel %vm232, %v563, 0
    %804 = vmatprep.subr.mxu0 0.0
    %805 = vmatpush1.msra.mxu0 0.0
    %806 = vmatprep.subr.mxu0 0.0
    %807 = vmatpush1.msra.mxu0 0.0
    %808 = vmatprep.subr.mxu0 0.0
    %809 = vmatpush1.msra.mxu0 0.0
    %810 = vmatprep.subr.mxu0 0.0
    %811 = vmatpush1.msra.mxu0 0.0
    %812 = vmatprep.subr.mxu0 0.0
    %813 = vmatpush1.msra.mxu0 0.0
    %814 = vmatprep.subr.mxu0 0.0
    %815 = vmatpush1.msra.mxu0 0.0
    %816 = vmatprep.subr.mxu0 0.0
    %817 = vmatpush1.msra.mxu0 0.0
    %818 = vmatprep.subr.mxu0 0.0
    %819 = vmatpush1.msra.mxu0 0.0
    %820 = vmatprep.subr.mxu0 0.0
    %821 = vmatpush1.msra.mxu0 0.0
    %822 = vmatprep.subr.mxu0 0.0
    %823 = vmatpush1.msra.mxu0 0.0
    %824 = vmatprep.subr.mxu0 0.0
    %825 = vmatpush1.msra.mxu0 0.0
    %826 = vmatprep.subr.mxu0 0.0
    %827 = vmatpush1.msra.mxu0 0.0
    %828 = vmatprep.subr.mxu0 0.0
    %829 = vmatpush1.msra.mxu0 0.0
    %830 = vmatprep.subr.mxu0 0.0
    %831 = vmatpush1.msra.mxu0 0.0
    %832 = vmatprep.subr.mxu0 0.0
    %833 = vmatpush1.msra.mxu0 0.0
    %834 = vmatprep.subr.mxu0 0.0
    %835 = vmatpush1.msra.mxu0 %v387
    %836 = vmatprep.subr.mxu0 0.0
    %837 = vmatpush2.msra.mxu0 0.0
    %838 = vmatprep.subr.mxu0 0.0
    %839 = vmatpush2.msra.mxu0 0.0
    %840 = vmatprep.subr.mxu0 0.0
    %841 = vmatpush2.msra.mxu0 0.0
    %842 = vmatprep.subr.mxu0 0.0
    %843 = vmatpush2.msra.mxu0 0.0
    %844 = vmatprep.subr.mxu0 0.0
    %845 = vmatpush2.msra.mxu0 0.0
    %846 = vmatprep.subr.mxu0 0.0
    %847 = vmatpush2.msra.mxu0 0.0
    %848 = vmatprep.subr.mxu0 0.0
    %849 = vmatpush2.msra.mxu0 0.0
    %850 = vmatprep.subr.mxu0 0.0
    %851 = vmatpush2.msra.mxu0 0.0
    %852 = vmatprep.subr.mxu0 0.0
    %853 = vmatpush2.msra.mxu0 0.0
    %854 = vmatprep.subr.mxu0 0.0
    %855 = vmatpush2.msra.mxu0 0.0
    %856 = vmatprep.subr.mxu0 0.0
    %857 = vmatpush2.msra.mxu0 0.0
    %858 = vmatprep.subr.mxu0 0.0
    %859 = vmatpush2.msra.mxu0 0.0
    %860 = vmatprep.subr.mxu0 0.0
    %861 = vmatpush2.msra.mxu0 0.0
    %862 = vmatprep.subr.mxu0 0.0
    %863 = vmatpush2.msra.mxu0 0.0
    %864 = vmatprep.subr.mxu0 0.0
    %865 = vmatpush2.msra.mxu0 0.0
    %866 = vmatprep.subr.mxu0 0.0
    %867 = vmatpush2.msra.mxu0 0.0
    %868 = vmatprep.mubr.f32.mxu0 0.0
    %869 = vmatmul.mubr.f32.gmra.mxu0 %v802
    %v870 = vpop.f32.mrf.mxu0
    %v871 = vadd.f32 %v798, %v870
    %v872 = vpop.f32.mrf.mxu0
    %873 = vdwg.mxu0
    %874 = vrot.lane.b32.xlu0 %v385, 112
    %v875 = vpop.permute.xlu0 %874
    %876 = vrot.lane.b32.xlu0 %v383, 88
    %v877 = vpop.permute.xlu0 %876
    %v878 = vsel %vm232, %v875, 0
    %v880 = vsel %vm232, %v877, 0
    %882 = vmatprep.subr.mxu0 0.0
    %883 = vmatpush1.xpose.msra.mxu0 0.0
    %884 = vmatprep.subr.mxu0 0.0
    %885 = vmatpush1.xpose.msra.mxu0 0.0
    %886 = vmatprep.subr.mxu0 0.0
    %887 = vmatpush1.xpose.msra.mxu0 0.0
    %888 = vmatprep.subr.mxu0 0.0
    %889 = vmatpush1.xpose.msra.mxu0 0.0
    %890 = vmatprep.subr.mxu0 0.0
    %891 = vmatpush1.xpose.msra.mxu0 0.0
    %892 = vmatprep.subr.mxu0 0.0
    %893 = vmatpush1.xpose.msra.mxu0 0.0
    %894 = vmatprep.subr.mxu0 0.0
    %895 = vmatpush1.xpose.msra.mxu0 0.0
    %896 = vmatprep.subr.mxu0 0.0
    %897 = vmatpush1.xpose.msra.mxu0 0.0
    %898 = vmatprep.subr.mxu0 0.0
    %899 = vmatpush1.xpose.msra.mxu0 0.0
    %900 = vmatprep.subr.mxu0 0.0
    %901 = vmatpush1.xpose.msra.mxu0 0.0
    %902 = vmatprep.subr.mxu0 0.0
    %903 = vmatpush1.xpose.msra.mxu0 0.0
    %904 = vmatprep.subr.mxu0 0.0
    %905 = vmatpush1.xpose.msra.mxu0 0.0
    %906 = vmatprep.subr.mxu0 0.0
    %907 = vmatpush1.xpose.msra.mxu0 0.0
    %908 = vmatprep.subr.mxu0 0.0
    %909 = vmatpush1.xpose.msra.mxu0 0.0
    %910 = vmatprep.subr.mxu0 0.0
    %911 = vmatpush1.xpose.msra.mxu0 0.0
    %912 = vmatprep.subr.mxu0 0.0
    %913 = vmatpush1.xpose.msra.mxu0 %v880
    %914 = vmatprep.subr.mxu0 0.0
    %915 = vmatpush2.xpose.msra.mxu0 0.0
    %916 = vmatprep.subr.mxu0 0.0
    %917 = vmatpush2.xpose.msra.mxu0 0.0
    %918 = vmatprep.subr.mxu0 0.0
    %919 = vmatpush2.xpose.msra.mxu0 0.0
    %920 = vmatprep.subr.mxu0 0.0
    %921 = vmatpush2.xpose.msra.mxu0 0.0
    %922 = vmatprep.subr.mxu0 0.0
    %923 = vmatpush2.xpose.msra.mxu0 0.0
    %924 = vmatprep.subr.mxu0 0.0
    %925 = vmatpush2.xpose.msra.mxu0 0.0
    %926 = vmatprep.subr.mxu0 0.0
    %927 = vmatpush2.xpose.msra.mxu0 0.0
    %928 = vmatprep.subr.mxu0 0.0
    %929 = vmatpush2.xpose.msra.mxu0 0.0
    %930 = vmatprep.subr.mxu0 0.0
    %931 = vmatpush2.xpose.msra.mxu0 0.0
    %932 = vmatprep.subr.mxu0 0.0
    %933 = vmatpush2.xpose.msra.mxu0 0.0
    %934 = vmatprep.subr.mxu0 0.0
    %935 = vmatpush2.xpose.msra.mxu0 0.0
    %936 = vmatprep.subr.mxu0 0.0
    %937 = vmatpush2.xpose.msra.mxu0 0.0
    %938 = vmatprep.subr.mxu0 0.0
    %939 = vmatpush2.xpose.msra.mxu0 0.0
    %940 = vmatprep.subr.mxu0 0.0
    %941 = vmatpush2.xpose.msra.mxu0 0.0
    %942 = vmatprep.subr.mxu0 0.0
    %943 = vmatpush2.xpose.msra.mxu0 0.0
    %944 = vmatprep.subr.mxu0 0.0
    %945 = vmatpush2.xpose.msra.mxu0 0.0
    %946 = vmatprep.mubr.f32.mxu0 0.0
    %947 = vmatmul.mubr.f32.gmra.mxu0 %v878
    %v948 = vpop.f32.mrf.mxu0
    %v949 = vadd.f32 0.0, %v948
    %v950 = vpop.f32.mrf.mxu0
    %951 = vdwg.mxu0
    %v952 = vmul.f32 %v949, 0.033333335
    %v953 = vtanh.pop %v952
    %v954 = vmul.f32 %v953, 30.0
    %v955 = vsel %vm395, %v954, -3.4028235e+38
    %v956 = vsel %vm232, %v955, -inf
    %957 = vmax.xlane.f32.xlu0 %v956
    %v958 = vpop.xlane.xlu0 %957
    %v959 = vsub.f32 %v955, %v958
    %v960 = vmul.f32 %v959, 1.442695
    %v961 = vpow.pop %v960
    %v962 = vsel %vm232, %v961, 0.0
    %963 = vadd.xlane.f32.xlu0 %v962
    %v964 = vpop.xlane.xlu0 %963
    %v965 = vrcp.pop %v964
    %v966 = vmul.f32 %v961, %v965
    %967 = vrot.lane.b32.xlu0 %v186, 72
    %v968 = vpop.permute.xlu0 %967
    %v971 = vsel %vm232, %v966, 0
    %973 = vmatprep.subr.mxu0 0.0
    %974 = vmatpush1.msra.mxu0 0.0
    %975 = vmatprep.subr.mxu0 0.0
    %976 = vmatpush1.msra.mxu0 0.0
    %977 = vmatprep.subr.mxu0 0.0
    %978 = vmatpush1.msra.mxu0 0.0
    %979 = vmatprep.subr.mxu0 0.0
    %980 = vmatpush1.msra.mxu0 0.0
    %981 = vmatprep.subr.mxu0 0.0
    %982 = vmatpush1.msra.mxu0 0.0
    %983 = vmatprep.subr.mxu0 0.0
    %984 = vmatpush1.msra.mxu0 0.0
    %985 = vmatprep.subr.mxu0 0.0
    %986 = vmatpush1.msra.mxu0 0.0
    %987 = vmatprep.subr.mxu0 0.0
    %988 = vmatpush1.msra.mxu0 0.0
    %989 = vmatprep.subr.mxu0 0.0
    %990 = vmatpush1.msra.mxu0 0.0
    %991 = vmatprep.subr.mxu0 0.0
    %992 = vmatpush1.msra.mxu0 0.0
    %993 = vmatprep.subr.mxu0 0.0
    %994 = vmatpush1.msra.mxu0 0.0
    %995 = vmatprep.subr.mxu0 0.0
    %996 = vmatpush1.msra.mxu0 0.0
    %997 = vmatprep.subr.mxu0 0.0
    %998 = vmatpush1.msra.mxu0 0.0
    %999 = vmatprep.subr.mxu0 0.0
    %1000 = vmatpush1.msra.mxu0 0.0
    %1001 = vmatprep.subr.mxu0 0.0
    %1002 = vmatpush1.msra.mxu0 0.0
    %1003 = vmatprep.subr.mxu0 0.0
    %1004 = vmatpush1.msra.mxu0 %v968
    %1005 = vmatprep.subr.mxu0 0.0
    %1006 = vmatpush2.msra.mxu0 0.0
    %1007 = vmatprep.subr.mxu0 0.0
    %1008 = vmatpush2.msra.mxu0 0.0
    %1009 = vmatprep.subr.mxu0 0.0
    %1010 = vmatpush2.msra.mxu0 0.0
    %1011 = vmatprep.subr.mxu0 0.0
    %1012 = vmatpush2.msra.mxu0 0.0
    %1013 = vmatprep.subr.mxu0 0.0
    %1014 = vmatpush2.msra.mxu0 0.0
    %1015 = vmatprep.subr.mxu0 0.0
    %1016 = vmatpush2.msra.mxu0 0.0
    %1017 = vmatprep.subr.mxu0 0.0
    %1018 = vmatpush2.msra.mxu0 0.0
    %1019 = vmatprep.subr.mxu0 0.0
    %1020 = vmatpush2.msra.mxu0 0.0
    %1021 = vmatprep.subr.mxu0 0.0
    %1022 = vmatpush2.msra.mxu0 0.0
    %1023 = vmatprep.subr.mxu0 0.0
    %1024 = vmatpush2.msra.mxu0 0.0
    %1025 = vmatprep.subr.mxu0 0.0
    %1026 = vmatpush2.msra.mxu0 0.0
    %1027 = vmatprep.subr.mxu0 0.0
    %1028 = vmatpush2.msra.mxu0 0.0
    %1029 = vmatprep.subr.mxu0 0.0
    %1030 = vmatpush2.msra.mxu0 0.0
    %1031 = vmatprep.subr.mxu0 0.0
    %1032 = vmatpush2.msra.mxu0 0.0
    %1033 = vmatprep.subr.mxu0 0.0
    %1034 = vmatpush2.msra.mxu0 0.0
    %1035 = vmatprep.subr.mxu0 0.0
    %1036 = vmatpush2.msra.mxu0 0.0
    %1037 = vmatprep.mubr.f32.mxu0 0.0
    %1038 = vmatmul.mubr.f32.gmra.mxu0 %v971
    %v1039 = vpop.f32.mrf.mxu0
    %v1040 = vadd.f32 0.0, %v1039
    %v1041 = vpop.f32.mrf.mxu0
    %1042 = vdwg.mxu0
    %v1044 = vsel %vm232, %v1040, 0
    %1046 = vmatprep.subr.mxu0 0.0
    %1047 = vmatpush1.msra.mxu0 0.0
    %1048 = vmatprep.subr.mxu0 0.0
    %1049 = vmatpush1.msra.mxu0 0.0
    %1050 = vmatprep.subr.mxu0 0.0
    %1051 = vmatpush1.msra.mxu0 0.0
    %1052 = vmatprep.subr.mxu0 0.0
    %1053 = vmatpush1.msra.mxu0 0.0
    %1054 = vmatprep.subr.mxu0 0.0
    %1055 = vmatpush1.msra.mxu0 0.0
    %1056 = vmatprep.subr.mxu0 0.0
    %1057 = vmatpush1.msra.mxu0 0.0
    %1058 = vmatprep.subr.mxu0 0.0
    %1059 = vmatpush1.msra.mxu0 0.0
    %1060 = vmatprep.subr.mxu0 0.0
    %1061 = vmatpush1.msra.mxu0 0.0
    %1062 = vmatprep.subr.mxu0 0.0
    %1063 = vmatpush1.msra.mxu0 0.0
    %1064 = vmatprep.subr.mxu0 0.0
    %1065 = vmatpush1.msra.mxu0 0.0
    %1066 = vmatprep.subr.mxu0 0.0
    %1067 = vmatpush1.msra.mxu0 0.0
    %1068 = vmatprep.subr.mxu0 0.0
    %1069 = vmatpush1.msra.mxu0 0.0
    %1070 = vmatprep.subr.mxu0 0.0
    %1071 = vmatpush1.msra.mxu0 0.0
    %1072 = vmatprep.subr.mxu0 0.0
    %1073 = vmatpush1.msra.mxu0 0.0
    %1074 = vmatprep.subr.mxu0 0.0
    %1075 = vmatpush1.msra.mxu0 0.0
    %1076 = vmatprep.subr.mxu0 0.0
    %1077 = vmatpush1.msra.mxu0 %v389
    %1078 = vmatprep.subr.mxu0 0.0
    %1079 = vmatpush2.msra.mxu0 0.0
    %1080 = vmatprep.subr.mxu0 0.0
    %1081 = vmatpush2.msra.mxu0 0.0
    %1082 = vmatprep.subr.mxu0 0.0
    %1083 = vmatpush2.msra.mxu0 0.0
    %1084 = vmatprep.subr.mxu0 0.0
    %1085 = vmatpush2.msra.mxu0 0.0
    %1086 = vmatprep.subr.mxu0 0.0
    %1087 = vmatpush2.msra.mxu0 0.0
    %1088 = vmatprep.subr.mxu0 0.0
    %1089 = vmatpush2.msra.mxu0 0.0
    %1090 = vmatprep.subr.mxu0 0.0
    %1091 = vmatpush2.msra.mxu0 0.0
    %1092 = vmatprep.subr.mxu0 0.0
    %1093 = vmatpush2.msra.mxu0 0.0
    %1094 = vmatprep.subr.mxu0 0.0
    %1095 = vmatpush2.msra.mxu0 0.0
    %1096 = vmatprep.subr.mxu0 0.0
    %1097 = vmatpush2.msra.mxu0 0.0
    %1098 = vmatprep.subr.mxu0 0.0
    %1099 = vmatpush2.msra.mxu0 0.0
    %1100 = vmatprep.subr.mxu0 0.0
    %1101 = vmatpush2.msra.mxu0 0.0
    %1102 = vmatprep.subr.mxu0 0.0
    %1103 = vmatpush2.msra.mxu0 0.0
    %1104 = vmatprep.subr.mxu0 0.0
    %1105 = vmatpush2.msra.mxu0 0.0
    %1106 = vmatprep.subr.mxu0 0.0
    %1107 = vmatpush2.msra.mxu0 0.0
    %1108 = vmatprep.subr.mxu0 0.0
    %1109 = vmatpush2.msra.mxu0 0.0
    %1110 = vmatprep.mubr.f32.mxu0 0.0
    %1111 = vmatmul.mubr.f32.gmra.mxu0 %v1044
    %v1112 = vpop.f32.mrf.mxu0
    %v1113 = vadd.f32 0.0, %v1112
    %v1114 = vpop.f32.mrf.mxu0
    %1115 = vdwg.mxu0
    %v1116 = vadd.f32 %v871, %v1113
    %1117 = vrot.lane.b32.xlu0 %v385, 104
    %v1118 = vpop.permute.xlu0 %1117
    %v1119 = vsel %vm232, %v1118, 0
    %1121 = vmatprep.subr.mxu0 0.0
    %1122 = vmatpush1.xpose.msra.mxu0 0.0
    %1123 = vmatprep.subr.mxu0 0.0
    %1124 = vmatpush1.xpose.msra.mxu0 0.0
    %1125 = vmatprep.subr.mxu0 0.0
    %1126 = vmatpush1.xpose.msra.mxu0 0.0
    %1127 = vmatprep.subr.mxu0 0.0
    %1128 = vmatpush1.xpose.msra.mxu0 0.0
    %1129 = vmatprep.subr.mxu0 0.0
    %1130 = vmatpush1.xpose.msra.mxu0 0.0
    %1131 = vmatprep.subr.mxu0 0.0
    %1132 = vmatpush1.xpose.msra.mxu0 0.0
    %1133 = vmatprep.subr.mxu0 0.0
    %1134 = vmatpush1.xpose.msra.mxu0 0.0
    %1135 = vmatprep.subr.mxu0 0.0
    %1136 = vmatpush1.xpose.msra.mxu0 0.0
    %1137 = vmatprep.subr.mxu0 0.0
    %1138 = vmatpush1.xpose.msra.mxu0 0.0
    %1139 = vmatprep.subr.mxu0 0.0
    %1140 = vmatpush1.xpose.msra.mxu0 0.0
    %1141 = vmatprep.subr.mxu0 0.0
    %1142 = vmatpush1.xpose.msra.mxu0 0.0
    %1143 = vmatprep.subr.mxu0 0.0
    %1144 = vmatpush1.xpose.msra.mxu0 0.0
    %1145 = vmatprep.subr.mxu0 0.0
    %1146 = vmatpush1.xpose.msra.mxu0 0.0
    %1147 = vmatprep.subr.mxu0 0.0
    %1148 = vmatpush1.xpose.msra.mxu0 0.0
    %1149 = vmatprep.subr.mxu0 0.0
    %1150 = vmatpush1.xpose.msra.mxu0 0.0
    %1151 = vmatprep.subr.mxu0 0.0
    %1152 = vmatpush1.xpose.msra.mxu0 %v880
    %1153 = vmatprep.subr.mxu0 0.0
    %1154 = vmatpush2.xpose.msra.mxu0 0.0
    %1155 = vmatprep.subr.mxu0 0.0
    %1156 = vmatpush2.xpose.msra.mxu0 0.0
    %1157 = vmatprep.subr.mxu0 0.0
    %1158 = vmatpush2.xpose.msra.mxu0 0.0
    %1159 = vmatprep.subr.mxu0 0.0
    %1160 = vmatpush2.xpose.msra.mxu0 0.0
    %1161 = vmatprep.subr.mxu0 0.0
    %1162 = vmatpush2.xpose.msra.mxu0 0.0
    %1163 = vmatprep.subr.mxu0 0.0
    %1164 = vmatpush2.xpose.msra.mxu0 0.0
    %1165 = vmatprep.subr.mxu0 0.0
    %1166 = vmatpush2.xpose.msra.mxu0 0.0
    %1167 = vmatprep.subr.mxu0 0.0
    %1168 = vmatpush2.xpose.msra.mxu0 0.0
    %1169 = vmatprep.subr.mxu0 0.0
    %1170 = vmatpush2.xpose.msra.mxu0 0.0
    %1171 = vmatprep.subr.mxu0 0.0
    %1172 = vmatpush2.xpose.msra.mxu0 0.0
    %1173 = vmatprep.subr.mxu0 0.0
    %1174 = vmatpush2.xpose.msra.mxu0 0.0
    %1175 = vmatprep.subr.mxu0 0.0
    %1176 = vmatpush2.xpose.msra.mxu0 0.0
    %1177 = vmatprep.subr.mxu0 0.0
    %1178 = vmatpush2.xpose.msra.mxu0 0.0
    %1179 = vmatprep.subr.mxu0 0.0
    %1180 = vmatpush2.xpose.msra.mxu0 0.0
    %1181 = vmatprep.subr.mxu0 0.0
    %1182 = vmatpush2.xpose.msra.mxu0 0.0
    %1183 = vmatprep.subr.mxu0 0.0
    %1184 = vmatpush2.xpose.msra.mxu0 0.0
    %1185 = vmatprep.mubr.f32.mxu0 0.0
    %1186 = vmatmul.mubr.f32.gmra.mxu0 %v1119
    %v1187 = vpop.f32.mrf.mxu0
    %v1188 = vadd.f32 0.0, %v1187
    %v1189 = vpop.f32.mrf.mxu0
    %1190 = vdwg.mxu0
    %v1191 = vmul.f32 %v1188, 0.033333335
    %v1192 = vtanh.pop %v1191
    %v1193 = vmul.f32 %v1192, 30.0
    %v1194 = vsel %vm395, %v1193, -3.4028235e+38
    %v1195 = vsel %vm232, %v1194, -inf
    %1196 = vmax.xlane.f32.xlu0 %v1195
    %v1197 = vpop.xlane.xlu0 %1196
    %v1198 = vsub.f32 %v1194, %v1197
    %v1199 = vmul.f32 %v1198, 1.442695
    %v1200 = vpow.pop %v1199
    %v1201 = vsel %vm232, %v1200, 0.0
    %1202 = vadd.xlane.f32.xlu0 %v1201
    %v1203 = vpop.xlane.xlu0 %1202
    %v1204 = vrcp.pop %v1203
    %v1205 = vmul.f32 %v1200, %v1204
    %v1207 = vsel %vm232, %v1205, 0
    %1209 = vmatprep.subr.mxu0 0.0
    %1210 = vmatpush1.msra.mxu0 0.0
    %1211 = vmatprep.subr.mxu0 0.0
    %1212 = vmatpush1.msra.mxu0 0.0
    %1213 = vmatprep.subr.mxu0 0.0
    %1214 = vmatpush1.msra.mxu0 0.0
    %1215 = vmatprep.subr.mxu0 0.0
    %1216 = vmatpush1.msra.mxu0 0.0
    %1217 = vmatprep.subr.mxu0 0.0
    %1218 = vmatpush1.msra.mxu0 0.0
    %1219 = vmatprep.subr.mxu0 0.0
    %1220 = vmatpush1.msra.mxu0 0.0
    %1221 = vmatprep.subr.mxu0 0.0
    %1222 = vmatpush1.msra.mxu0 0.0
    %1223 = vmatprep.subr.mxu0 0.0
    %1224 = vmatpush1.msra.mxu0 0.0
    %1225 = vmatprep.subr.mxu0 0.0
    %1226 = vmatpush1.msra.mxu0 0.0
    %1227 = vmatprep.subr.mxu0 0.0
    %1228 = vmatpush1.msra.mxu0 0.0
    %1229 = vmatprep.subr.mxu0 0.0
    %1230 = vmatpush1.msra.mxu0 0.0
    %1231 = vmatprep.subr.mxu0 0.0
    %1232 = vmatpush1.msra.mxu0 0.0
    %1233 = vmatprep.subr.mxu0 0.0
    %1234 = vmatpush1.msra.mxu0 0.0
    %1235 = vmatprep.subr.mxu0 0.0
    %1236 = vmatpush1.msra.mxu0 0.0
    %1237 = vmatprep.subr.mxu0 0.0
    %1238 = vmatpush1.msra.mxu0 0.0
    %1239 = vmatprep.subr.mxu0 0.0
    %1240 = vmatpush1.msra.mxu0 %v968
    %1241 = vmatprep.subr.mxu0 0.0
    %1242 = vmatpush2.msra.mxu0 0.0
    %1243 = vmatprep.subr.mxu0 0.0
    %1244 = vmatpush2.msra.mxu0 0.0
    %1245 = vmatprep.subr.mxu0 0.0
    %1246 = vmatpush2.msra.mxu0 0.0
    %1247 = vmatprep.subr.mxu0 0.0
    %1248 = vmatpush2.msra.mxu0 0.0
    %1249 = vmatprep.subr.mxu0 0.0
    %1250 = vmatpush2.msra.mxu0 0.0
    %1251 = vmatprep.subr.mxu0 0.0
    %1252 = vmatpush2.msra.mxu0 0.0
    %1253 = vmatprep.subr.mxu0 0.0
    %1254 = vmatpush2.msra.mxu0 0.0
    %1255 = vmatprep.subr.mxu0 0.0
    %1256 = vmatpush2.msra.mxu0 0.0
    %1257 = vmatprep.subr.mxu0 0.0
    %1258 = vmatpush2.msra.mxu0 0.0
    %1259 = vmatprep.subr.mxu0 0.0
    %1260 = vmatpush2.msra.mxu0 0.0
    %1261 = vmatprep.subr.mxu0 0.0
    %1262 = vmatpush2.msra.mxu0 0.0
    %1263 = vmatprep.subr.mxu0 0.0
    %1264 = vmatpush2.msra.mxu0 0.0
    %1265 = vmatprep.subr.mxu0 0.0
    %1266 = vmatpush2.msra.mxu0 0.0
    %1267 = vmatprep.subr.mxu0 0.0
    %1268 = vmatpush2.msra.mxu0 0.0
    %1269 = vmatprep.subr.mxu0 0.0
    %1270 = vmatpush2.msra.mxu0 0.0
    %1271 = vmatprep.subr.mxu0 0.0
    %1272 = vmatpush2.msra.mxu0 0.0
    %1273 = vmatprep.mubr.f32.mxu0 0.0
    %1274 = vmatmul.mubr.f32.gmra.mxu0 %v1207
    %v1275 = vpop.f32.mrf.mxu0
    %v1276 = vadd.f32 0.0, %v1275
    %v1277 = vpop.f32.mrf.mxu0
    %1278 = vdwg.mxu0
    %v1280 = vsel %vm232, %v1276, 0
    %1282 = vmatprep.subr.mxu0 0.0
    %1283 = vmatpush1.msra.mxu0 0.0
    %1284 = vmatprep.subr.mxu0 0.0
    %1285 = vmatpush1.msra.mxu0 0.0
    %1286 = vmatprep.subr.mxu0 0.0
    %1287 = vmatpush1.msra.mxu0 0.0
    %1288 = vmatprep.subr.mxu0 0.0
    %1289 = vmatpush1.msra.mxu0 0.0
    %1290 = vmatprep.subr.mxu0 0.0
    %1291 = vmatpush1.msra.mxu0 0.0
    %1292 = vmatprep.subr.mxu0 0.0
    %1293 = vmatpush1.msra.mxu0 0.0
    %1294 = vmatprep.subr.mxu0 0.0
    %1295 = vmatpush1.msra.mxu0 0.0
    %1296 = vmatprep.subr.mxu0 0.0
    %1297 = vmatpush1.msra.mxu0 0.0
    %1298 = vmatprep.subr.mxu0 0.0
    %1299 = vmatpush1.msra.mxu0 0.0
    %1300 = vmatprep.subr.mxu0 0.0
    %1301 = vmatpush1.msra.mxu0 0.0
    %1302 = vmatprep.subr.mxu0 0.0
    %1303 = vmatpush1.msra.mxu0 0.0
    %1304 = vmatprep.subr.mxu0 0.0
    %1305 = vmatpush1.msra.mxu0 0.0
    %1306 = vmatprep.subr.mxu0 0.0
    %1307 = vmatpush1.msra.mxu0 0.0
    %1308 = vmatprep.subr.mxu0 0.0
    %1309 = vmatpush1.msra.mxu0 0.0
    %1310 = vmatprep.subr.mxu0 0.0
    %1311 = vmatpush1.msra.mxu0 0.0
    %1312 = vmatprep.subr.mxu0 0.0
    %1313 = vmatpush1.msra.mxu0 %v390
    %1314 = vmatprep.subr.mxu0 0.0
    %1315 = vmatpush2.msra.mxu0 0.0
    %1316 = vmatprep.subr.mxu0 0.0
    %1317 = vmatpush2.msra.mxu0 0.0
    %1318 = vmatprep.subr.mxu0 0.0
    %1319 = vmatpush2.msra.mxu0 0.0
    %1320 = vmatprep.subr.mxu0 0.0
    %1321 = vmatpush2.msra.mxu0 0.0
    %1322 = vmatprep.subr.mxu0 0.0
    %1323 = vmatpush2.msra.mxu0 0.0
    %1324 = vmatprep.subr.mxu0 0.0
    %1325 = vmatpush2.msra.mxu0 0.0
    %1326 = vmatprep.subr.mxu0 0.0
    %1327 = vmatpush2.msra.mxu0 0.0
    %1328 = vmatprep.subr.mxu0 0.0
    %1329 = vmatpush2.msra.mxu0 0.0
    %1330 = vmatprep.subr.mxu0 0.0
    %1331 = vmatpush2.msra.mxu0 0.0
    %1332 = vmatprep.subr.mxu0 0.0
    %1333 = vmatpush2.msra.mxu0 0.0
    %1334 = vmatprep.subr.mxu0 0.0
    %1335 = vmatpush2.msra.mxu0 0.0
    %1336 = vmatprep.subr.mxu0 0.0
    %1337 = vmatpush2.msra.mxu0 0.0
    %1338 = vmatprep.subr.mxu0 0.0
    %1339 = vmatpush2.msra.mxu0 0.0
    %1340 = vmatprep.subr.mxu0 0.0
    %1341 = vmatpush2.msra.mxu0 0.0
    %1342 = vmatprep.subr.mxu0 0.0
    %1343 = vmatpush2.msra.mxu0 0.0
    %1344 = vmatprep.subr.mxu0 0.0
    %1345 = vmatpush2.msra.mxu0 0.0
    %1346 = vmatprep.mubr.f32.mxu0 0.0
    %1347 = vmatmul.mubr.f32.gmra.mxu0 %v1280
    %v1348 = vpop.f32.mrf.mxu0
    %v1349 = vadd.f32 0.0, %v1348
    %v1350 = vpop.f32.mrf.mxu0
    %1351 = vdwg.mxu0
    %v1352 = vadd.f32 %v1116, %v1349
    %1353 = vst.msk [vmem:[#allocation13] sm:$0xff] %vm112, %v1352
    %1355 = vrot.lane.b32.xlu0 %v384, 96
    %v1356 = vpop.permute.xlu0 %1355
    %v1358 = vsel %vm232, %v386, 0
    %v1360 = vsel %vm232, %v1356, 0
    %1362 = vmatprep.subr.mxu0 0.0
    %1363 = vmatpush1.xpose.msra.mxu0 0.0
    %1364 = vmatprep.subr.mxu0 0.0
    %1365 = vmatpush1.xpose.msra.mxu0 0.0
    %1366 = vmatprep.subr.mxu0 0.0
    %1367 = vmatpush1.xpose.msra.mxu0 0.0
    %1368 = vmatprep.subr.mxu0 0.0
    %1369 = vmatpush1.xpose.msra.mxu0 0.0
    %1370 = vmatprep.subr.mxu0 0.0
    %1371 = vmatpush1.xpose.msra.mxu0 0.0
    %1372 = vmatprep.subr.mxu0 0.0
    %1373 = vmatpush1.xpose.msra.mxu0 0.0
    %1374 = vmatprep.subr.mxu0 0.0
    %1375 = vmatpush1.xpose.msra.mxu0 0.0
    %1376 = vmatprep.subr.mxu0 0.0
    %1377 = vmatpush1.xpose.msra.mxu0 0.0
    %1378 = vmatprep.subr.mxu0 0.0
    %1379 = vmatpush1.xpose.msra.mxu0 0.0
    %1380 = vmatprep.subr.mxu0 0.0
    %1381 = vmatpush1.xpose.msra.mxu0 0.0
    %1382 = vmatprep.subr.mxu0 0.0
    %1383 = vmatpush1.xpose.msra.mxu0 0.0
    %1384 = vmatprep.subr.mxu0 0.0
    %1385 = vmatpush1.xpose.msra.mxu0 0.0
    %1386 = vmatprep.subr.mxu0 0.0
    %1387 = vmatpush1.xpose.msra.mxu0 0.0
    %1388 = vmatprep.subr.mxu0 0.0
    %1389 = vmatpush1.xpose.msra.mxu0 0.0
    %1390 = vmatprep.subr.mxu0 0.0
    %1391 = vmatpush1.xpose.msra.mxu0 0.0
    %1392 = vmatprep.subr.mxu0 0.0
    %1393 = vmatpush1.xpose.msra.mxu0 %v1360
    %1394 = vmatprep.subr.mxu0 0.0
    %1395 = vmatpush2.xpose.msra.mxu0 0.0
    %1396 = vmatprep.subr.mxu0 0.0
    %1397 = vmatpush2.xpose.msra.mxu0 0.0
    %1398 = vmatprep.subr.mxu0 0.0
    %1399 = vmatpush2.xpose.msra.mxu0 0.0
    %1400 = vmatprep.subr.mxu0 0.0
    %1401 = vmatpush2.xpose.msra.mxu0 0.0
    %1402 = vmatprep.subr.mxu0 0.0
    %1403 = vmatpush2.xpose.msra.mxu0 0.0
    %1404 = vmatprep.subr.mxu0 0.0
    %1405 = vmatpush2.xpose.msra.mxu0 0.0
    %1406 = vmatprep.subr.mxu0 0.0
    %1407 = vmatpush2.xpose.msra.mxu0 0.0
    %1408 = vmatprep.subr.mxu0 0.0
    %1409 = vmatpush2.xpose.msra.mxu0 0.0
    %1410 = vmatprep.subr.mxu0 0.0
    %1411 = vmatpush2.xpose.msra.mxu0 0.0
    %1412 = vmatprep.subr.mxu0 0.0
    %1413 = vmatpush2.xpose.msra.mxu0 0.0
    %1414 = vmatprep.subr.mxu0 0.0
    %1415 = vmatpush2.xpose.msra.mxu0 0.0
    %1416 = vmatprep.subr.mxu0 0.0
    %1417 = vmatpush2.xpose.msra.mxu0 0.0
    %1418 = vmatprep.subr.mxu0 0.0
    %1419 = vmatpush2.xpose.msra.mxu0 0.0
    %1420 = vmatprep.subr.mxu0 0.0
    %1421 = vmatpush2.xpose.msra.mxu0 0.0
    %1422 = vmatprep.subr.mxu0 0.0
    %1423 = vmatpush2.xpose.msra.mxu0 0.0
    %1424 = vmatprep.subr.mxu0 0.0
    %1425 = vmatpush2.xpose.msra.mxu0 0.0
    %1426 = vmatprep.mubr.f32.mxu0 0.0
    %1427 = vmatmul.mubr.f32.gmra.mxu0 %v1358
    %v1428 = vpop.f32.mrf.mxu0
    %v1429 = vadd.f32 0.0, %v1428
    %v1430 = vpop.f32.mrf.mxu0
    %1431 = vdwg.mxu0
    %v1432 = vmul.f32 %v1429, 0.033333335
    %v1433 = vtanh.pop %v1432
    %v1434 = vmul.f32 %v1433, 30.0
    %v1435 = vsel %vm395, %v1434, -3.4028235e+38
    %v1436 = vsel %vm232, %v1435, -inf
    %1437 = vmax.xlane.f32.xlu0 %v1436
    %v1438 = vpop.xlane.xlu0 %1437
    %v1439 = vsub.f32 %v1435, %v1438
    %v1440 = vmul.f32 %v1439, 1.442695
    %v1441 = vpow.pop %v1440
    %v1442 = vsel %vm232, %v1441, 0.0
    %1443 = vadd.xlane.f32.xlu0 %v1442
    %v1444 = vpop.xlane.xlu0 %1443
    %v1445 = vrcp.pop %v1444
    %v1446 = vmul.f32 %v1441, %v1445
    %1448 = vrot.lane.b32.xlu0 %v191, 80
    %v1449 = vpop.permute.xlu0 %1448
    %v1452 = vsel %vm232, %v1446, 0
    %1454 = vmatprep.subr.mxu0 0.0
    %1455 = vmatpush1.msra.mxu0 0.0
    %1456 = vmatprep.subr.mxu0 0.0
    %1457 = vmatpush1.msra.mxu0 0.0
    %1458 = vmatprep.subr.mxu0 0.0
    %1459 = vmatpush1.msra.mxu0 0.0
    %1460 = vmatprep.subr.mxu0 0.0
    %1461 = vmatpush1.msra.mxu0 0.0
    %1462 = vmatprep.subr.mxu0 0.0
    %1463 = vmatpush1.msra.mxu0 0.0
    %1464 = vmatprep.subr.mxu0 0.0
    %1465 = vmatpush1.msra.mxu0 0.0
    %1466 = vmatprep.subr.mxu0 0.0
    %1467 = vmatpush1.msra.mxu0 0.0
    %1468 = vmatprep.subr.mxu0 0.0
    %1469 = vmatpush1.msra.mxu0 0.0
    %1470 = vmatprep.subr.mxu0 0.0
    %1471 = vmatpush1.msra.mxu0 0.0
    %1472 = vmatprep.subr.mxu0 0.0
    %1473 = vmatpush1.msra.mxu0 0.0
    %1474 = vmatprep.subr.mxu0 0.0
    %1475 = vmatpush1.msra.mxu0 0.0
    %1476 = vmatprep.subr.mxu0 0.0
    %1477 = vmatpush1.msra.mxu0 0.0
    %1478 = vmatprep.subr.mxu0 0.0
    %1479 = vmatpush1.msra.mxu0 0.0
    %1480 = vmatprep.subr.mxu0 0.0
    %1481 = vmatpush1.msra.mxu0 0.0
    %1482 = vmatprep.subr.mxu0 0.0
    %1483 = vmatpush1.msra.mxu0 0.0
    %1484 = vmatprep.subr.mxu0 0.0
    %1485 = vmatpush1.msra.mxu0 %v1449
    %1486 = vmatprep.subr.mxu0 0.0
    %1487 = vmatpush2.msra.mxu0 0.0
    %1488 = vmatprep.subr.mxu0 0.0
    %1489 = vmatpush2.msra.mxu0 0.0
    %1490 = vmatprep.subr.mxu0 0.0
    %1491 = vmatpush2.msra.mxu0 0.0
    %1492 = vmatprep.subr.mxu0 0.0
    %1493 = vmatpush2.msra.mxu0 0.0
    %1494 = vmatprep.subr.mxu0 0.0
    %1495 = vmatpush2.msra.mxu0 0.0
    %1496 = vmatprep.subr.mxu0 0.0
    %1497 = vmatpush2.msra.mxu0 0.0
    %1498 = vmatprep.subr.mxu0 0.0
    %1499 = vmatpush2.msra.mxu0 0.0
    %1500 = vmatprep.subr.mxu0 0.0
    %1501 = vmatpush2.msra.mxu0 0.0
    %1502 = vmatprep.subr.mxu0 0.0
    %1503 = vmatpush2.msra.mxu0 0.0
    %1504 = vmatprep.subr.mxu0 0.0
    %1505 = vmatpush2.msra.mxu0 0.0
    %1506 = vmatprep.subr.mxu0 0.0
    %1507 = vmatpush2.msra.mxu0 0.0
    %1508 = vmatprep.subr.mxu0 0.0
    %1509 = vmatpush2.msra.mxu0 0.0
    %1510 = vmatprep.subr.mxu0 0.0
    %1511 = vmatpush2.msra.mxu0 0.0
    %1512 = vmatprep.subr.mxu0 0.0
    %1513 = vmatpush2.msra.mxu0 0.0
    %1514 = vmatprep.subr.mxu0 0.0
    %1515 = vmatpush2.msra.mxu0 0.0
    %1516 = vmatprep.subr.mxu0 0.0
    %1517 = vmatpush2.msra.mxu0 0.0
    %1518 = vmatprep.mubr.f32.mxu0 0.0
    %1519 = vmatmul.mubr.f32.gmra.mxu0 %v1452
    %v1520 = vpop.f32.mrf.mxu0
    %v1521 = vadd.f32 0.0, %v1520
    %v1522 = vpop.f32.mrf.mxu0
    %1523 = vdwg.mxu0
    %1524 = vrot.lane.b32.xlu0 %v386, 120
    %v1525 = vpop.permute.xlu0 %1524
    %v1526 = vsel %vm232, %v1525, 0
    %1528 = vmatprep.subr.mxu0 0.0
    %1529 = vmatpush1.xpose.msra.mxu0 0.0
    %1530 = vmatprep.subr.mxu0 0.0
    %1531 = vmatpush1.xpose.msra.mxu0 0.0
    %1532 = vmatprep.subr.mxu0 0.0
    %1533 = vmatpush1.xpose.msra.mxu0 0.0
    %1534 = vmatprep.subr.mxu0 0.0
    %1535 = vmatpush1.xpose.msra.mxu0 0.0
    %1536 = vmatprep.subr.mxu0 0.0
    %1537 = vmatpush1.xpose.msra.mxu0 0.0
    %1538 = vmatprep.subr.mxu0 0.0
    %1539 = vmatpush1.xpose.msra.mxu0 0.0
    %1540 = vmatprep.subr.mxu0 0.0
    %1541 = vmatpush1.xpose.msra.mxu0 0.0
    %1542 = vmatprep.subr.mxu0 0.0
    %1543 = vmatpush1.xpose.msra.mxu0 0.0
    %1544 = vmatprep.subr.mxu0 0.0
    %1545 = vmatpush1.xpose.msra.mxu0 0.0
    %1546 = vmatprep.subr.mxu0 0.0
    %1547 = vmatpush1.xpose.msra.mxu0 0.0
    %1548 = vmatprep.subr.mxu0 0.0
    %1549 = vmatpush1.xpose.msra.mxu0 0.0
    %1550 = vmatprep.subr.mxu0 0.0
    %1551 = vmatpush1.xpose.msra.mxu0 0.0
    %1552 = vmatprep.subr.mxu0 0.0
    %1553 = vmatpush1.xpose.msra.mxu0 0.0
    %1554 = vmatprep.subr.mxu0 0.0
    %1555 = vmatpush1.xpose.msra.mxu0 0.0
    %1556 = vmatprep.subr.mxu0 0.0
    %1557 = vmatpush1.xpose.msra.mxu0 0.0
    %1558 = vmatprep.subr.mxu0 0.0
    %1559 = vmatpush1.xpose.msra.mxu0 %v1360
    %1560 = vmatprep.subr.mxu0 0.0
    %1561 = vmatpush2.xpose.msra.mxu0 0.0
    %1562 = vmatprep.subr.mxu0 0.0
    %1563 = vmatpush2.xpose.msra.mxu0 0.0
    %1564 = vmatprep.subr.mxu0 0.0
    %1565 = vmatpush2.xpose.msra.mxu0 0.0
    %1566 = vmatprep.subr.mxu0 0.0
    %1567 = vmatpush2.xpose.msra.mxu0 0.0
    %1568 = vmatprep.subr.mxu0 0.0
    %1569 = vmatpush2.xpose.msra.mxu0 0.0
    %1570 = vmatprep.subr.mxu0 0.0
    %1571 = vmatpush2.xpose.msra.mxu0 0.0
    %1572 = vmatprep.subr.mxu0 0.0
    %1573 = vmatpush2.xpose.msra.mxu0 0.0
    %1574 = vmatprep.subr.mxu0 0.0
    %1575 = vmatpush2.xpose.msra.mxu0 0.0
    %1576 = vmatprep.subr.mxu0 0.0
    %1577 = vmatpush2.xpose.msra.mxu0 0.0
    %1578 = vmatprep.subr.mxu0 0.0
    %1579 = vmatpush2.xpose.msra.mxu0 0.0
    %1580 = vmatprep.subr.mxu0 0.0
    %1581 = vmatpush2.xpose.msra.mxu0 0.0
    %1582 = vmatprep.subr.mxu0 0.0
    %1583 = vmatpush2.xpose.msra.mxu0 0.0
    %1584 = vmatprep.subr.mxu0 0.0
    %1585 = vmatpush2.xpose.msra.mxu0 0.0
    %1586 = vmatprep.subr.mxu0 0.0
    %1587 = vmatpush2.xpose.msra.mxu0 0.0
    %1588 = vmatprep.subr.mxu0 0.0
    %1589 = vmatpush2.xpose.msra.mxu0 0.0
    %1590 = vmatprep.subr.mxu0 0.0
    %1591 = vmatpush2.xpose.msra.mxu0 0.0
    %1592 = vmatprep.mubr.f32.mxu0 0.0
    %1593 = vmatmul.mubr.f32.gmra.mxu0 %v1526
    %v1594 = vpop.f32.mrf.mxu0
    %v1595 = vadd.f32 0.0, %v1594
    %v1596 = vpop.f32.mrf.mxu0
    %1597 = vdwg.mxu0
    %v1598 = vmul.f32 %v1595, 0.033333335
    %v1599 = vtanh.pop %v1598
    %v1600 = vmul.f32 %v1599, 30.0
    %v1601 = vsel %vm395, %v1600, -3.4028235e+38
    %v1602 = vsel %vm232, %v1601, -inf
    %1603 = vmax.xlane.f32.xlu0 %v1602
    %v1604 = vpop.xlane.xlu0 %1603
    %v1605 = vsub.f32 %v1601, %v1604
    %v1606 = vmul.f32 %v1605, 1.442695
    %v1607 = vpow.pop %v1606
    %v1608 = vsel %vm232, %v1607, 0.0
    %1609 = vadd.xlane.f32.xlu0 %v1608
    %v1610 = vpop.xlane.xlu0 %1609
    %v1611 = vrcp.pop %v1610
    %v1612 = vmul.f32 %v1607, %v1611
    %v1614 = vsel %vm232, %v1612, 0
    %1616 = vmatprep.subr.mxu0 0.0
    %1617 = vmatpush1.msra.mxu0 0.0
    %1618 = vmatprep.subr.mxu0 0.0
    %1619 = vmatpush1.msra.mxu0 0.0
    %1620 = vmatprep.subr.mxu0 0.0
    %1621 = vmatpush1.msra.mxu0 0.0
    %1622 = vmatprep.subr.mxu0 0.0
    %1623 = vmatpush1.msra.mxu0 0.0
    %1624 = vmatprep.subr.mxu0 0.0
    %1625 = vmatpush1.msra.mxu0 0.0
    %1626 = vmatprep.subr.mxu0 0.0
    %1627 = vmatpush1.msra.mxu0 0.0
    %1628 = vmatprep.subr.mxu0 0.0
    %1629 = vmatpush1.msra.mxu0 0.0
    %1630 = vmatprep.subr.mxu0 0.0
    %1631 = vmatpush1.msra.mxu0 0.0
    %1632 = vmatprep.subr.mxu0 0.0
    %1633 = vmatpush1.msra.mxu0 0.0
    %1634 = vmatprep.subr.mxu0 0.0
    %1635 = vmatpush1.msra.mxu0 0.0
    %1636 = vmatprep.subr.mxu0 0.0
    %1637 = vmatpush1.msra.mxu0 0.0
    %1638 = vmatprep.subr.mxu0 0.0
    %1639 = vmatpush1.msra.mxu0 0.0
    %1640 = vmatprep.subr.mxu0 0.0
    %1641 = vmatpush1.msra.mxu0 0.0
    %1642 = vmatprep.subr.mxu0 0.0
    %1643 = vmatpush1.msra.mxu0 0.0
    %1644 = vmatprep.subr.mxu0 0.0
    %1645 = vmatpush1.msra.mxu0 0.0
    %1646 = vmatprep.subr.mxu0 0.0
    %1647 = vmatpush1.msra.mxu0 %v1449
    %1648 = vmatprep.subr.mxu0 0.0
    %1649 = vmatpush2.msra.mxu0 0.0
    %1650 = vmatprep.subr.mxu0 0.0
    %1651 = vmatpush2.msra.mxu0 0.0
    %1652 = vmatprep.subr.mxu0 0.0
    %1653 = vmatpush2.msra.mxu0 0.0
    %1654 = vmatprep.subr.mxu0 0.0
    %1655 = vmatpush2.msra.mxu0 0.0
    %1656 = vmatprep.subr.mxu0 0.0
    %1657 = vmatpush2.msra.mxu0 0.0
    %1658 = vmatprep.subr.mxu0 0.0
    %1659 = vmatpush2.msra.mxu0 0.0
    %1660 = vmatprep.subr.mxu0 0.0
    %1661 = vmatpush2.msra.mxu0 0.0
    %1662 = vmatprep.subr.mxu0 0.0
    %1663 = vmatpush2.msra.mxu0 0.0
    %1664 = vmatprep.subr.mxu0 0.0
    %1665 = vmatpush2.msra.mxu0 0.0
    %1666 = vmatprep.subr.mxu0 0.0
    %1667 = vmatpush2.msra.mxu0 0.0
    %1668 = vmatprep.subr.mxu0 0.0
    %1669 = vmatpush2.msra.mxu0 0.0
    %1670 = vmatprep.subr.mxu0 0.0
    %1671 = vmatpush2.msra.mxu0 0.0
    %1672 = vmatprep.subr.mxu0 0.0
    %1673 = vmatpush2.msra.mxu0 0.0
    %1674 = vmatprep.subr.mxu0 0.0
    %1675 = vmatpush2.msra.mxu0 0.0
    %1676 = vmatprep.subr.mxu0 0.0
    %1677 = vmatpush2.msra.mxu0 0.0
    %1678 = vmatprep.subr.mxu0 0.0
    %1679 = vmatpush2.msra.mxu0 0.0
    %1680 = vmatprep.mubr.f32.mxu0 0.0
    %1681 = vmatmul.mubr.f32.gmra.mxu0 %v1614
    %v1682 = vpop.f32.mrf.mxu0
    %v1683 = vadd.f32 0.0, %v1682
    %v1684 = vpop.f32.mrf.mxu0
    %1685 = vdwg.mxu0
    %v1687 = vsel %vm232, %v1683, 0
    %1689 = vmatprep.subr.mxu0 0.0
    %1690 = vmatpush1.msra.mxu0 0.0
    %1691 = vmatprep.subr.mxu0 0.0
    %1692 = vmatpush1.msra.mxu0 0.0
    %1693 = vmatprep.subr.mxu0 0.0
    %1694 = vmatpush1.msra.mxu0 0.0
    %1695 = vmatprep.subr.mxu0 0.0
    %1696 = vmatpush1.msra.mxu0 0.0
    %1697 = vmatprep.subr.mxu0 0.0
    %1698 = vmatpush1.msra.mxu0 0.0
    %1699 = vmatprep.subr.mxu0 0.0
    %1700 = vmatpush1.msra.mxu0 0.0
    %1701 = vmatprep.subr.mxu0 0.0
    %1702 = vmatpush1.msra.mxu0 0.0
    %1703 = vmatprep.subr.mxu0 0.0
    %1704 = vmatpush1.msra.mxu0 0.0
    %1705 = vmatprep.subr.mxu0 0.0
    %1706 = vmatpush1.msra.mxu0 0.0
    %1707 = vmatprep.subr.mxu0 0.0
    %1708 = vmatpush1.msra.mxu0 0.0
    %1709 = vmatprep.subr.mxu0 0.0
    %1710 = vmatpush1.msra.mxu0 0.0
    %1711 = vmatprep.subr.mxu0 0.0
    %1712 = vmatpush1.msra.mxu0 0.0
    %1713 = vmatprep.subr.mxu0 0.0
    %1714 = vmatpush1.msra.mxu0 0.0
    %1715 = vmatprep.subr.mxu0 0.0
    %1716 = vmatpush1.msra.mxu0 0.0
    %1717 = vmatprep.subr.mxu0 0.0
    %1718 = vmatpush1.msra.mxu0 0.0
    %1719 = vmatprep.subr.mxu0 0.0
    %1720 = vmatpush1.msra.mxu0 %v388
    %1721 = vmatprep.subr.mxu0 0.0
    %1722 = vmatpush2.msra.mxu0 0.0
    %1723 = vmatprep.subr.mxu0 0.0
    %1724 = vmatpush2.msra.mxu0 0.0
    %1725 = vmatprep.subr.mxu0 0.0
    %1726 = vmatpush2.msra.mxu0 0.0
    %1727 = vmatprep.subr.mxu0 0.0
    %1728 = vmatpush2.msra.mxu0 0.0
    %1729 = vmatprep.subr.mxu0 0.0
    %1730 = vmatpush2.msra.mxu0 0.0
    %1731 = vmatprep.subr.mxu0 0.0
    %1732 = vmatpush2.msra.mxu0 0.0
    %1733 = vmatprep.subr.mxu0 0.0
    %1734 = vmatpush2.msra.mxu0 0.0
    %1735 = vmatprep.subr.mxu0 0.0
    %1736 = vmatpush2.msra.mxu0 0.0
    %1737 = vmatprep.subr.mxu0 0.0
    %1738 = vmatpush2.msra.mxu0 0.0
    %1739 = vmatprep.subr.mxu0 0.0
    %1740 = vmatpush2.msra.mxu0 0.0
    %1741 = vmatprep.subr.mxu0 0.0
    %1742 = vmatpush2.msra.mxu0 0.0
    %1743 = vmatprep.subr.mxu0 0.0
    %1744 = vmatpush2.msra.mxu0 0.0
    %1745 = vmatprep.subr.mxu0 0.0
    %1746 = vmatpush2.msra.mxu0 0.0
    %1747 = vmatprep.subr.mxu0 0.0
    %1748 = vmatpush2.msra.mxu0 0.0
    %1749 = vmatprep.subr.mxu0 0.0
    %1750 = vmatpush2.msra.mxu0 0.0
    %1751 = vmatprep.subr.mxu0 0.0
    %1752 = vmatpush2.msra.mxu0 0.0
    %1753 = vmatprep.mubr.f32.mxu0 0.0
    %1754 = vmatmul.mubr.f32.gmra.mxu0 %v1687
    %v1755 = vpop.f32.mrf.mxu0
    %v1756 = vadd.f32 0.0, %v1755
    %v1757 = vpop.f32.mrf.mxu0
    %1758 = vdwg.mxu0
    %v1760 = vsel %vm232, %v1521, 0
    %1762 = vmatprep.subr.mxu0 0.0
    %1763 = vmatpush1.msra.mxu0 0.0
    %1764 = vmatprep.subr.mxu0 0.0
    %1765 = vmatpush1.msra.mxu0 0.0
    %1766 = vmatprep.subr.mxu0 0.0
    %1767 = vmatpush1.msra.mxu0 0.0
    %1768 = vmatprep.subr.mxu0 0.0
    %1769 = vmatpush1.msra.mxu0 0.0
    %1770 = vmatprep.subr.mxu0 0.0
    %1771 = vmatpush1.msra.mxu0 0.0
    %1772 = vmatprep.subr.mxu0 0.0
    %1773 = vmatpush1.msra.mxu0 0.0
    %1774 = vmatprep.subr.mxu0 0.0
    %1775 = vmatpush1.msra.mxu0 0.0
    %1776 = vmatprep.subr.mxu0 0.0
    %1777 = vmatpush1.msra.mxu0 0.0
    %1778 = vmatprep.subr.mxu0 0.0
    %1779 = vmatpush1.msra.mxu0 0.0
    %1780 = vmatprep.subr.mxu0 0.0
    %1781 = vmatpush1.msra.mxu0 0.0
    %1782 = vmatprep.subr.mxu0 0.0
    %1783 = vmatpush1.msra.mxu0 0.0
    %1784 = vmatprep.subr.mxu0 0.0
    %1785 = vmatpush1.msra.mxu0 0.0
    %1786 = vmatprep.subr.mxu0 0.0
    %1787 = vmatpush1.msra.mxu0 0.0
    %1788 = vmatprep.subr.mxu0 0.0
    %1789 = vmatpush1.msra.mxu0 0.0
    %1790 = vmatprep.subr.mxu0 0.0
    %1791 = vmatpush1.msra.mxu0 0.0
    %1792 = vmatprep.subr.mxu0 0.0
    %1793 = vmatpush1.msra.mxu0 %v387
    %1794 = vmatprep.subr.mxu0 0.0
    %1795 = vmatpush2.msra.mxu0 0.0
    %1796 = vmatprep.subr.mxu0 0.0
    %1797 = vmatpush2.msra.mxu0 0.0
    %1798 = vmatprep.subr.mxu0 0.0
    %1799 = vmatpush2.msra.mxu0 0.0
    %1800 = vmatprep.subr.mxu0 0.0
    %1801 = vmatpush2.msra.mxu0 0.0
    %1802 = vmatprep.subr.mxu0 0.0
    %1803 = vmatpush2.msra.mxu0 0.0
    %1804 = vmatprep.subr.mxu0 0.0
    %1805 = vmatpush2.msra.mxu0 0.0
    %1806 = vmatprep.subr.mxu0 0.0
    %1807 = vmatpush2.msra.mxu0 0.0
    %1808 = vmatprep.subr.mxu0 0.0
    %1809 = vmatpush2.msra.mxu0 0.0
    %1810 = vmatprep.subr.mxu0 0.0
    %1811 = vmatpush2.msra.mxu0 0.0
    %1812 = vmatprep.subr.mxu0 0.0
    %1813 = vmatpush2.msra.mxu0 0.0
    %1814 = vmatprep.subr.mxu0 0.0
    %1815 = vmatpush2.msra.mxu0 0.0
    %1816 = vmatprep.subr.mxu0 0.0
    %1817 = vmatpush2.msra.mxu0 0.0
    %1818 = vmatprep.subr.mxu0 0.0
    %1819 = vmatpush2.msra.mxu0 0.0
    %1820 = vmatprep.subr.mxu0 0.0
    %1821 = vmatpush2.msra.mxu0 0.0
    %1822 = vmatprep.subr.mxu0 0.0
    %1823 = vmatpush2.msra.mxu0 0.0
    %1824 = vmatprep.subr.mxu0 0.0
    %1825 = vmatpush2.msra.mxu0 0.0
    %1826 = vmatprep.mubr.f32.mxu0 0.0
    %1827 = vmatmul.mubr.f32.gmra.mxu0 %v1760
    %v1828 = vpop.f32.mrf.mxu0
    %v1829 = vadd.f32 %v1756, %v1828
    %v1830 = vpop.f32.mrf.mxu0
    %1831 = vdwg.mxu0
    %1832 = vrot.lane.b32.xlu0 %v386, 112
    %v1833 = vpop.permute.xlu0 %1832
    %1834 = vrot.lane.b32.xlu0 %v384, 88
    %v1835 = vpop.permute.xlu0 %1834
    %v1836 = vsel %vm232, %v1833, 0
    %v1838 = vsel %vm232, %v1835, 0
    %1840 = vmatprep.subr.mxu0 0.0
    %1841 = vmatpush1.xpose.msra.mxu0 0.0
    %1842 = vmatprep.subr.mxu0 0.0
    %1843 = vmatpush1.xpose.msra.mxu0 0.0
    %1844 = vmatprep.subr.mxu0 0.0
    %1845 = vmatpush1.xpose.msra.mxu0 0.0
    %1846 = vmatprep.subr.mxu0 0.0
    %1847 = vmatpush1.xpose.msra.mxu0 0.0
    %1848 = vmatprep.subr.mxu0 0.0
    %1849 = vmatpush1.xpose.msra.mxu0 0.0
    %1850 = vmatprep.subr.mxu0 0.0
    %1851 = vmatpush1.xpose.msra.mxu0 0.0
    %1852 = vmatprep.subr.mxu0 0.0
    %1853 = vmatpush1.xpose.msra.mxu0 0.0
    %1854 = vmatprep.subr.mxu0 0.0
    %1855 = vmatpush1.xpose.msra.mxu0 0.0
    %1856 = vmatprep.subr.mxu0 0.0
    %1857 = vmatpush1.xpose.msra.mxu0 0.0
    %1858 = vmatprep.subr.mxu0 0.0
    %1859 = vmatpush1.xpose.msra.mxu0 0.0
    %1860 = vmatprep.subr.mxu0 0.0
    %1861 = vmatpush1.xpose.msra.mxu0 0.0
    %1862 = vmatprep.subr.mxu0 0.0
    %1863 = vmatpush1.xpose.msra.mxu0 0.0
    %1864 = vmatprep.subr.mxu0 0.0
    %1865 = vmatpush1.xpose.msra.mxu0 0.0
    %1866 = vmatprep.subr.mxu0 0.0
    %1867 = vmatpush1.xpose.msra.mxu0 0.0
    %1868 = vmatprep.subr.mxu0 0.0
    %1869 = vmatpush1.xpose.msra.mxu0 0.0
    %1870 = vmatprep.subr.mxu0 0.0
    %1871 = vmatpush1.xpose.msra.mxu0 %v1838
    %1872 = vmatprep.subr.mxu0 0.0
    %1873 = vmatpush2.xpose.msra.mxu0 0.0
    %1874 = vmatprep.subr.mxu0 0.0
    %1875 = vmatpush2.xpose.msra.mxu0 0.0
    %1876 = vmatprep.subr.mxu0 0.0
    %1877 = vmatpush2.xpose.msra.mxu0 0.0
    %1878 = vmatprep.subr.mxu0 0.0
    %1879 = vmatpush2.xpose.msra.mxu0 0.0
    %1880 = vmatprep.subr.mxu0 0.0
    %1881 = vmatpush2.xpose.msra.mxu0 0.0
    %1882 = vmatprep.subr.mxu0 0.0
    %1883 = vmatpush2.xpose.msra.mxu0 0.0
    %1884 = vmatprep.subr.mxu0 0.0
    %1885 = vmatpush2.xpose.msra.mxu0 0.0
    %1886 = vmatprep.subr.mxu0 0.0
    %1887 = vmatpush2.xpose.msra.mxu0 0.0
    %1888 = vmatprep.subr.mxu0 0.0
    %1889 = vmatpush2.xpose.msra.mxu0 0.0
    %1890 = vmatprep.subr.mxu0 0.0
    %1891 = vmatpush2.xpose.msra.mxu0 0.0
    %1892 = vmatprep.subr.mxu0 0.0
    %1893 = vmatpush2.xpose.msra.mxu0 0.0
    %1894 = vmatprep.subr.mxu0 0.0
    %1895 = vmatpush2.xpose.msra.mxu0 0.0
    %1896 = vmatprep.subr.mxu0 0.0
    %1897 = vmatpush2.xpose.msra.mxu0 0.0
    %1898 = vmatprep.subr.mxu0 0.0
    %1899 = vmatpush2.xpose.msra.mxu0 0.0
    %1900 = vmatprep.subr.mxu0 0.0
    %1901 = vmatpush2.xpose.msra.mxu0 0.0
    %1902 = vmatprep.subr.mxu0 0.0
    %1903 = vmatpush2.xpose.msra.mxu0 0.0
    %1904 = vmatprep.mubr.f32.mxu0 0.0
    %1905 = vmatmul.mubr.f32.gmra.mxu0 %v1836
    %v1906 = vpop.f32.mrf.mxu0
    %v1907 = vadd.f32 0.0, %v1906
    %v1908 = vpop.f32.mrf.mxu0
    %1909 = vdwg.mxu0
    %v1910 = vmul.f32 %v1907, 0.033333335
    %v1911 = vtanh.pop %v1910
    %v1912 = vmul.f32 %v1911, 30.0
    %v1913 = vsel %vm395, %v1912, -3.4028235e+38
    %v1914 = vsel %vm232, %v1913, -inf
    %1915 = vmax.xlane.f32.xlu0 %v1914
    %v1916 = vpop.xlane.xlu0 %1915
    %v1917 = vsub.f32 %v1913, %v1916
    %v1918 = vmul.f32 %v1917, 1.442695
    %v1919 = vpow.pop %v1918
    %v1920 = vsel %vm232, %v1919, 0.0
    %1921 = vadd.xlane.f32.xlu0 %v1920
    %v1922 = vpop.xlane.xlu0 %1921
    %v1923 = vrcp.pop %v1922
    %v1924 = vmul.f32 %v1919, %v1923
    %1925 = vrot.lane.b32.xlu0 %v191, 72
    %v1926 = vpop.permute.xlu0 %1925
    %v1929 = vsel %vm232, %v1924, 0
    %1931 = vmatprep.subr.mxu0 0.0
    %1932 = vmatpush1.msra.mxu0 0.0
    %1933 = vmatprep.subr.mxu0 0.0
    %1934 = vmatpush1.msra.mxu0 0.0
    %1935 = vmatprep.subr.mxu0 0.0
    %1936 = vmatpush1.msra.mxu0 0.0
    %1937 = vmatprep.subr.mxu0 0.0
    %1938 = vmatpush1.msra.mxu0 0.0
    %1939 = vmatprep.subr.mxu0 0.0
    %1940 = vmatpush1.msra.mxu0 0.0
    %1941 = vmatprep.subr.mxu0 0.0
    %1942 = vmatpush1.msra.mxu0 0.0
    %1943 = vmatprep.subr.mxu0 0.0
    %1944 = vmatpush1.msra.mxu0 0.0
    %1945 = vmatprep.subr.mxu0 0.0
    %1946 = vmatpush1.msra.mxu0 0.0
    %1947 = vmatprep.subr.mxu0 0.0
    %1948 = vmatpush1.msra.mxu0 0.0
    %1949 = vmatprep.subr.mxu0 0.0
    %1950 = vmatpush1.msra.mxu0 0.0
    %1951 = vmatprep.subr.mxu0 0.0
    %1952 = vmatpush1.msra.mxu0 0.0
    %1953 = vmatprep.subr.mxu0 0.0
    %1954 = vmatpush1.msra.mxu0 0.0
    %1955 = vmatprep.subr.mxu0 0.0
    %1956 = vmatpush1.msra.mxu0 0.0
    %1957 = vmatprep.subr.mxu0 0.0
    %1958 = vmatpush1.msra.mxu0 0.0
    %1959 = vmatprep.subr.mxu0 0.0
    %1960 = vmatpush1.msra.mxu0 0.0
    %1961 = vmatprep.subr.mxu0 0.0
    %1962 = vmatpush1.msra.mxu0 %v1926
    %1963 = vmatprep.subr.mxu0 0.0
    %1964 = vmatpush2.msra.mxu0 0.0
    %1965 = vmatprep.subr.mxu0 0.0
    %1966 = vmatpush2.msra.mxu0 0.0
    %1967 = vmatprep.subr.mxu0 0.0
    %1968 = vmatpush2.msra.mxu0 0.0
    %1969 = vmatprep.subr.mxu0 0.0
    %1970 = vmatpush2.msra.mxu0 0.0
    %1971 = vmatprep.subr.mxu0 0.0
    %1972 = vmatpush2.msra.mxu0 0.0
    %1973 = vmatprep.subr.mxu0 0.0
    %1974 = vmatpush2.msra.mxu0 0.0
    %1975 = vmatprep.subr.mxu0 0.0
    %1976 = vmatpush2.msra.mxu0 0.0
    %1977 = vmatprep.subr.mxu0 0.0
    %1978 = vmatpush2.msra.mxu0 0.0
    %1979 = vmatprep.subr.mxu0 0.0
    %1980 = vmatpush2.msra.mxu0 0.0
    %1981 = vmatprep.subr.mxu0 0.0
    %1982 = vmatpush2.msra.mxu0 0.0
    %1983 = vmatprep.subr.mxu0 0.0
    %1984 = vmatpush2.msra.mxu0 0.0
    %1985 = vmatprep.subr.mxu0 0.0
    %1986 = vmatpush2.msra.mxu0 0.0
    %1987 = vmatprep.subr.mxu0 0.0
    %1988 = vmatpush2.msra.mxu0 0.0
    %1989 = vmatprep.subr.mxu0 0.0
    %1990 = vmatpush2.msra.mxu0 0.0
    %1991 = vmatprep.subr.mxu0 0.0
    %1992 = vmatpush2.msra.mxu0 0.0
    %1993 = vmatprep.subr.mxu0 0.0
    %1994 = vmatpush2.msra.mxu0 0.0
    %1995 = vmatprep.mubr.f32.mxu0 0.0
    %1996 = vmatmul.mubr.f32.gmra.mxu0 %v1929
    %v1997 = vpop.f32.mrf.mxu0
    %v1998 = vadd.f32 0.0, %v1997
    %v1999 = vpop.f32.mrf.mxu0
    %2000 = vdwg.mxu0
    %v2002 = vsel %vm232, %v1998, 0
    %2004 = vmatprep.subr.mxu0 0.0
    %2005 = vmatpush1.msra.mxu0 0.0
    %2006 = vmatprep.subr.mxu0 0.0
    %2007 = vmatpush1.msra.mxu0 0.0
    %2008 = vmatprep.subr.mxu0 0.0
    %2009 = vmatpush1.msra.mxu0 0.0
    %2010 = vmatprep.subr.mxu0 0.0
    %2011 = vmatpush1.msra.mxu0 0.0
    %2012 = vmatprep.subr.mxu0 0.0
    %2013 = vmatpush1.msra.mxu0 0.0
    %2014 = vmatprep.subr.mxu0 0.0
    %2015 = vmatpush1.msra.mxu0 0.0
    %2016 = vmatprep.subr.mxu0 0.0
    %2017 = vmatpush1.msra.mxu0 0.0
    %2018 = vmatprep.subr.mxu0 0.0
    %2019 = vmatpush1.msra.mxu0 0.0
    %2020 = vmatprep.subr.mxu0 0.0
    %2021 = vmatpush1.msra.mxu0 0.0
    %2022 = vmatprep.subr.mxu0 0.0
    %2023 = vmatpush1.msra.mxu0 0.0
    %2024 = vmatprep.subr.mxu0 0.0
    %2025 = vmatpush1.msra.mxu0 0.0
    %2026 = vmatprep.subr.mxu0 0.0
    %2027 = vmatpush1.msra.mxu0 0.0
    %2028 = vmatprep.subr.mxu0 0.0
    %2029 = vmatpush1.msra.mxu0 0.0
    %2030 = vmatprep.subr.mxu0 0.0
    %2031 = vmatpush1.msra.mxu0 0.0
    %2032 = vmatprep.subr.mxu0 0.0
    %2033 = vmatpush1.msra.mxu0 0.0
    %2034 = vmatprep.subr.mxu0 0.0
    %2035 = vmatpush1.msra.mxu0 %v389
    %2036 = vmatprep.subr.mxu0 0.0
    %2037 = vmatpush2.msra.mxu0 0.0
    %2038 = vmatprep.subr.mxu0 0.0
    %2039 = vmatpush2.msra.mxu0 0.0
    %2040 = vmatprep.subr.mxu0 0.0
    %2041 = vmatpush2.msra.mxu0 0.0
    %2042 = vmatprep.subr.mxu0 0.0
    %2043 = vmatpush2.msra.mxu0 0.0
    %2044 = vmatprep.subr.mxu0 0.0
    %2045 = vmatpush2.msra.mxu0 0.0
    %2046 = vmatprep.subr.mxu0 0.0
    %2047 = vmatpush2.msra.mxu0 0.0
    %2048 = vmatprep.subr.mxu0 0.0
    %2049 = vmatpush2.msra.mxu0 0.0
    %2050 = vmatprep.subr.mxu0 0.0
    %2051 = vmatpush2.msra.mxu0 0.0
    %2052 = vmatprep.subr.mxu0 0.0
    %2053 = vmatpush2.msra.mxu0 0.0
    %2054 = vmatprep.subr.mxu0 0.0
    %2055 = vmatpush2.msra.mxu0 0.0
    %2056 = vmatprep.subr.mxu0 0.0
    %2057 = vmatpush2.msra.mxu0 0.0
    %2058 = vmatprep.subr.mxu0 0.0
    %2059 = vmatpush2.msra.mxu0 0.0
    %2060 = vmatprep.subr.mxu0 0.0
    %2061 = vmatpush2.msra.mxu0 0.0
    %2062 = vmatprep.subr.mxu0 0.0
    %2063 = vmatpush2.msra.mxu0 0.0
    %2064 = vmatprep.subr.mxu0 0.0
    %2065 = vmatpush2.msra.mxu0 0.0
    %2066 = vmatprep.subr.mxu0 0.0
    %2067 = vmatpush2.msra.mxu0 0.0
    %2068 = vmatprep.mubr.f32.mxu0 0.0
    %2069 = vmatmul.mubr.f32.gmra.mxu0 %v2002
    %v2070 = vpop.f32.mrf.mxu0
    %v2071 = vadd.f32 0.0, %v2070
    %v2072 = vpop.f32.mrf.mxu0
    %2073 = vdwg.mxu0
    %v2074 = vadd.f32 %v1829, %v2071
    %2075 = vrot.lane.b32.xlu0 %v386, 104
    %v2076 = vpop.permute.xlu0 %2075
    %v2077 = vsel %vm232, %v2076, 0
    %2079 = vmatprep.subr.mxu0 0.0
    %2080 = vmatpush1.xpose.msra.mxu0 0.0
    %2081 = vmatprep.subr.mxu0 0.0
    %2082 = vmatpush1.xpose.msra.mxu0 0.0
    %2083 = vmatprep.subr.mxu0 0.0
    %2084 = vmatpush1.xpose.msra.mxu0 0.0
    %2085 = vmatprep.subr.mxu0 0.0
    %2086 = vmatpush1.xpose.msra.mxu0 0.0
    %2087 = vmatprep.subr.mxu0 0.0
    %2088 = vmatpush1.xpose.msra.mxu0 0.0
    %2089 = vmatprep.subr.mxu0 0.0
    %2090 = vmatpush1.xpose.msra.mxu0 0.0
    %2091 = vmatprep.subr.mxu0 0.0
    %2092 = vmatpush1.xpose.msra.mxu0 0.0
    %2093 = vmatprep.subr.mxu0 0.0
    %2094 = vmatpush1.xpose.msra.mxu0 0.0
    %2095 = vmatprep.subr.mxu0 0.0
    %2096 = vmatpush1.xpose.msra.mxu0 0.0
    %2097 = vmatprep.subr.mxu0 0.0
    %2098 = vmatpush1.xpose.msra.mxu0 0.0
    %2099 = vmatprep.subr.mxu0 0.0
    %2100 = vmatpush1.xpose.msra.mxu0 0.0
    %2101 = vmatprep.subr.mxu0 0.0
    %2102 = vmatpush1.xpose.msra.mxu0 0.0
    %2103 = vmatprep.subr.mxu0 0.0
    %2104 = vmatpush1.xpose.msra.mxu0 0.0
    %2105 = vmatprep.subr.mxu0 0.0
    %2106 = vmatpush1.xpose.msra.mxu0 0.0
    %2107 = vmatprep.subr.mxu0 0.0
    %2108 = vmatpush1.xpose.msra.mxu0 0.0
    %2109 = vmatprep.subr.mxu0 0.0
    %2110 = vmatpush1.xpose.msra.mxu0 %v1838
    %2111 = vmatprep.subr.mxu0 0.0
    %2112 = vmatpush2.xpose.msra.mxu0 0.0
    %2113 = vmatprep.subr.mxu0 0.0
    %2114 = vmatpush2.xpose.msra.mxu0 0.0
    %2115 = vmatprep.subr.mxu0 0.0
    %2116 = vmatpush2.xpose.msra.mxu0 0.0
    %2117 = vmatprep.subr.mxu0 0.0
    %2118 = vmatpush2.xpose.msra.mxu0 0.0
    %2119 = vmatprep.subr.mxu0 0.0
    %2120 = vmatpush2.xpose.msra.mxu0 0.0
    %2121 = vmatprep.subr.mxu0 0.0
    %2122 = vmatpush2.xpose.msra.mxu0 0.0
    %2123 = vmatprep.subr.mxu0 0.0
    %2124 = vmatpush2.xpose.msra.mxu0 0.0
    %2125 = vmatprep.subr.mxu0 0.0
    %2126 = vmatpush2.xpose.msra.mxu0 0.0
    %2127 = vmatprep.subr.mxu0 0.0
    %2128 = vmatpush2.xpose.msra.mxu0 0.0
    %2129 = vmatprep.subr.mxu0 0.0
    %2130 = vmatpush2.xpose.msra.mxu0 0.0
    %2131 = vmatprep.subr.mxu0 0.0
    %2132 = vmatpush2.xpose.msra.mxu0 0.0
    %2133 = vmatprep.subr.mxu0 0.0
    %2134 = vmatpush2.xpose.msra.mxu0 0.0
    %2135 = vmatprep.subr.mxu0 0.0
    %2136 = vmatpush2.xpose.msra.mxu0 0.0
    %2137 = vmatprep.subr.mxu0 0.0
    %2138 = vmatpush2.xpose.msra.mxu0 0.0
    %2139 = vmatprep.subr.mxu0 0.0
    %2140 = vmatpush2.xpose.msra.mxu0 0.0
    %2141 = vmatprep.subr.mxu0 0.0
    %2142 = vmatpush2.xpose.msra.mxu0 0.0
    %2143 = vmatprep.mubr.f32.mxu0 0.0
    %2144 = vmatmul.mubr.f32.gmra.mxu0 %v2077
    %v2145 = vpop.f32.mrf.mxu0
    %v2146 = vadd.f32 0.0, %v2145
    %v2147 = vpop.f32.mrf.mxu0
    %2148 = vdwg.mxu0
    %v2149 = vmul.f32 %v2146, 0.033333335
    %v2150 = vtanh.pop %v2149
    %v2151 = vmul.f32 %v2150, 30.0
    %v2152 = vsel %vm395, %v2151, -3.4028235e+38
    %v2153 = vsel %vm232, %v2152, -inf
    %2154 = vmax.xlane.f32.xlu0 %v2153
    %v2155 = vpop.xlane.xlu0 %2154
    %v2156 = vsub.f32 %v2152, %v2155
    %v2157 = vmul.f32 %v2156, 1.442695
    %v2158 = vpow.pop %v2157
    %v2159 = vsel %vm232, %v2158, 0.0
    %2160 = vadd.xlane.f32.xlu0 %v2159
    %v2161 = vpop.xlane.xlu0 %2160
    %v2162 = vrcp.pop %v2161
    %v2163 = vmul.f32 %v2158, %v2162
    %v2165 = vsel %vm232, %v2163, 0
    %2167 = vmatprep.subr.mxu0 0.0
    %2168 = vmatpush1.msra.mxu0 0.0
    %2169 = vmatprep.subr.mxu0 0.0
    %2170 = vmatpush1.msra.mxu0 0.0
    %2171 = vmatprep.subr.mxu0 0.0
    %2172 = vmatpush1.msra.mxu0 0.0
    %2173 = vmatprep.subr.mxu0 0.0
    %2174 = vmatpush1.msra.mxu0 0.0
    %2175 = vmatprep.subr.mxu0 0.0
    %2176 = vmatpush1.msra.mxu0 0.0
    %2177 = vmatprep.subr.mxu0 0.0
    %2178 = vmatpush1.msra.mxu0 0.0
    %2179 = vmatprep.subr.mxu0 0.0
    %2180 = vmatpush1.msra.mxu0 0.0
    %2181 = vmatprep.subr.mxu0 0.0
    %2182 = vmatpush1.msra.mxu0 0.0
    %2183 = vmatprep.subr.mxu0 0.0
    %2184 = vmatpush1.msra.mxu0 0.0
    %2185 = vmatprep.subr.mxu0 0.0
    %2186 = vmatpush1.msra.mxu0 0.0
    %2187 = vmatprep.subr.mxu0 0.0
    %2188 = vmatpush1.msra.mxu0 0.0
    %2189 = vmatprep.subr.mxu0 0.0
    %2190 = vmatpush1.msra.mxu0 0.0
    %2191 = vmatprep.subr.mxu0 0.0
    %2192 = vmatpush1.msra.mxu0 0.0
    %2193 = vmatprep.subr.mxu0 0.0
    %2194 = vmatpush1.msra.mxu0 0.0
    %2195 = vmatprep.subr.mxu0 0.0
    %2196 = vmatpush1.msra.mxu0 0.0
    %2197 = vmatprep.subr.mxu0 0.0
    %2198 = vmatpush1.msra.mxu0 %v1926
    %2199 = vmatprep.subr.mxu0 0.0
    %2200 = vmatpush2.msra.mxu0 0.0
    %2201 = vmatprep.subr.mxu0 0.0
    %2202 = vmatpush2.msra.mxu0 0.0
    %2203 = vmatprep.subr.mxu0 0.0
    %2204 = vmatpush2.msra.mxu0 0.0
    %2205 = vmatprep.subr.mxu0 0.0
    %2206 = vmatpush2.msra.mxu0 0.0
    %2207 = vmatprep.subr.mxu0 0.0
    %2208 = vmatpush2.msra.mxu0 0.0
    %2209 = vmatprep.subr.mxu0 0.0
    %2210 = vmatpush2.msra.mxu0 0.0
    %2211 = vmatprep.subr.mxu0 0.0
    %2212 = vmatpush2.msra.mxu0 0.0
    %2213 = vmatprep.subr.mxu0 0.0
    %2214 = vmatpush2.msra.mxu0 0.0
    %2215 = vmatprep.subr.mxu0 0.0
    %2216 = vmatpush2.msra.mxu0 0.0
    %2217 = vmatprep.subr.mxu0 0.0
    %2218 = vmatpush2.msra.mxu0 0.0
    %2219 = vmatprep.subr.mxu0 0.0
    %2220 = vmatpush2.msra.mxu0 0.0
    %2221 = vmatprep.subr.mxu0 0.0
    %2222 = vmatpush2.msra.mxu0 0.0
    %2223 = vmatprep.subr.mxu0 0.0
    %2224 = vmatpush2.msra.mxu0 0.0
    %2225 = vmatprep.subr.mxu0 0.0
    %2226 = vmatpush2.msra.mxu0 0.0
    %2227 = vmatprep.subr.mxu0 0.0
    %2228 = vmatpush2.msra.mxu0 0.0
    %2229 = vmatprep.subr.mxu0 0.0
    %2230 = vmatpush2.msra.mxu0 0.0
    %2231 = vmatprep.mubr.f32.mxu0 0.0
    %2232 = vmatmul.mubr.f32.gmra.mxu0 %v2165
    %v2233 = vpop.f32.mrf.mxu0
    %v2234 = vadd.f32 0.0, %v2233
    %v2235 = vpop.f32.mrf.mxu0
    %2236 = vdwg.mxu0
    %v2238 = vsel %vm232, %v2234, 0
    %2240 = vmatprep.subr.mxu0 0.0
    %2241 = vmatpush1.msra.mxu0 0.0
    %2242 = vmatprep.subr.mxu0 0.0
    %2243 = vmatpush1.msra.mxu0 0.0
    %2244 = vmatprep.subr.mxu0 0.0
    %2245 = vmatpush1.msra.mxu0 0.0
    %2246 = vmatprep.subr.mxu0 0.0
    %2247 = vmatpush1.msra.mxu0 0.0
    %2248 = vmatprep.subr.mxu0 0.0
    %2249 = vmatpush1.msra.mxu0 0.0
    %2250 = vmatprep.subr.mxu0 0.0
    %2251 = vmatpush1.msra.mxu0 0.0
    %2252 = vmatprep.subr.mxu0 0.0
    %2253 = vmatpush1.msra.mxu0 0.0
    %2254 = vmatprep.subr.mxu0 0.0
    %2255 = vmatpush1.msra.mxu0 0.0
    %2256 = vmatprep.subr.mxu0 0.0
    %2257 = vmatpush1.msra.mxu0 0.0
    %2258 = vmatprep.subr.mxu0 0.0
    %2259 = vmatpush1.msra.mxu0 0.0
    %2260 = vmatprep.subr.mxu0 0.0
    %2261 = vmatpush1.msra.mxu0 0.0
    %2262 = vmatprep.subr.mxu0 0.0
    %2263 = vmatpush1.msra.mxu0 0.0
    %2264 = vmatprep.subr.mxu0 0.0
    %2265 = vmatpush1.msra.mxu0 0.0
    %2266 = vmatprep.subr.mxu0 0.0
    %2267 = vmatpush1.msra.mxu0 0.0
    %2268 = vmatprep.subr.mxu0 0.0
    %2269 = vmatpush1.msra.mxu0 0.0
    %2270 = vmatprep.subr.mxu0 0.0
    %2271 = vmatpush1.msra.mxu0 %v390
    %2272 = vmatprep.subr.mxu0 0.0
    %2273 = vmatpush2.msra.mxu0 0.0
    %2274 = vmatprep.subr.mxu0 0.0
    %2275 = vmatpush2.msra.mxu0 0.0
    %2276 = vmatprep.subr.mxu0 0.0
    %2277 = vmatpush2.msra.mxu0 0.0
    %2278 = vmatprep.subr.mxu0 0.0
    %2279 = vmatpush2.msra.mxu0 0.0
    %2280 = vmatprep.subr.mxu0 0.0
    %2281 = vmatpush2.msra.mxu0 0.0
    %2282 = vmatprep.subr.mxu0 0.0
    %2283 = vmatpush2.msra.mxu0 0.0
    %2284 = vmatprep.subr.mxu0 0.0
    %2285 = vmatpush2.msra.mxu0 0.0
    %2286 = vmatprep.subr.mxu0 0.0
    %2287 = vmatpush2.msra.mxu0 0.0
    %2288 = vmatprep.subr.mxu0 0.0
    %2289 = vmatpush2.msra.mxu0 0.0
    %2290 = vmatprep.subr.mxu0 0.0
    %2291 = vmatpush2.msra.mxu0 0.0
    %2292 = vmatprep.subr.mxu0 0.0
    %2293 = vmatpush2.msra.mxu0 0.0
    %2294 = vmatprep.subr.mxu0 0.0
    %2295 = vmatpush2.msra.mxu0 0.0
    %2296 = vmatprep.subr.mxu0 0.0
    %2297 = vmatpush2.msra.mxu0 0.0
    %2298 = vmatprep.subr.mxu0 0.0
    %2299 = vmatpush2.msra.mxu0 0.0
    %2300 = vmatprep.subr.mxu0 0.0
    %2301 = vmatpush2.msra.mxu0 0.0
    %2302 = vmatprep.subr.mxu0 0.0
    %2303 = vmatpush2.msra.mxu0 0.0
    %2304 = vmatprep.mubr.f32.mxu0 0.0
    %2305 = vmatmul.mubr.f32.gmra.mxu0 %v2238
    %v2306 = vpop.f32.mrf.mxu0
    %v2307 = vadd.f32 0.0, %v2306
    %v2308 = vpop.f32.mrf.mxu0
    %2309 = vdwg.mxu0
    %v2310 = vadd.f32 %v2074, %v2307
    %s2311 = scalar_lea.vmem [#allocation13], 8
    %2312 = vst.msk [vmem:[%s2311] sm:$0xff] %vm112, %v2310
    // Predicated region
    $region50: #{tpu_custom_call.1} parent=1 // pred_check
      _
    $region51: #{tpu_custom_call.1} parent=1 // pred_check_branch
      %2314 = sbr.rel (0) target = $region53
    $region52: #{tpu_custom_call.1} parent=1 // pred_region
      %s2316 = ssub.s32 256, 256
      %2317 = vsyncadd [#allocation4], %s2316
      %s2318 = sshll.u32 [#allocation13], 4
      %s2319 = int_to_ptr.vmem [resolvable:$true] %s2318
      %2324 = dma.vmem_to_hbm [thread:$0]  %s2319, 256, %s6, [#allocation4], 128, 128, 8
    $region53: #{tpu_custom_call.1} parent=1 // pred_fallthru
      _
    // Predicated region
    $region54: #{tpu_custom_call.1} parent=1 // pred_check
      _
    $region55: #{tpu_custom_call.1} parent=1 // pred_check_branch
      %2326 = sbr.rel (0) target = $region57
    $region56: #{tpu_custom_call.1} parent=1 // pred_region
      %2327 = dma.done [#allocation4], 256
    $region57: #{tpu_custom_call.1} parent=1 // pred_fallthru
      _
    %2328 = vsyncpa [#allocation3], 1
    %2329 = vsyncpa [#allocation6], 1
    %2330 = vsyncpa [#allocation9], 1
    %2331 = vsyncpa [#allocation12], 1
    %2332 = vsyncpa [#allocation4], 1

</llo_original>
